<compile_context>
chip_gen: v7x
topology: tpu7x:2x2x1
jax: 0.10.0
libtpu: 0.0.40
codegen_flags: <defaults>
</compile_context>

<pallas_src>
import functools

import jax
import jax.numpy as jnp
from jax.experimental import pallas as pl
from jax.experimental.pallas import tpu as pltpu


def _conv3x3_stage(xpad_ref, w_ref, b_ref, *, W, HW, lmask, rmask):
    """One Conv3x3(pad=1) + folded-BN bias + ReLU stage, W^T @ patches form.

    xpad_ref: (C, HW + 2W + 2) bf16 scratch; image at [W+1 : W+1+HW], pads zero
    w_ref   : (9, Cout, C) bf16, tap index t = ky*3 + kx (BN scale pre-folded)
    b_ref   : (Cout, 1) f32 folded bias
    returns : (Cout, HW) f32, post-ReLU
    """
    pad = W + 1
    acc = None
    for ox in (-1, 0, 1):                      # group taps by horizontal shift
        part = None
        for oy in (-1, 0, 1):
            start = pad + oy * W + ox          # static lane offset into xpad
            slab = xpad_ref[:, start:start + HW]            # (C, HW) bf16
            tap = w_ref[(oy + 1) * 3 + (ox + 1)]            # (Cout, C) bf16
            d = jnp.dot(tap, slab, preferred_element_type=jnp.float32)
            part = d if part is None else part + d
        if ox == -1:                           # kill column wrap at w == 0
            part = jnp.where(lmask, part, 0.0)
        elif ox == 1:                          # kill column wrap at w == W-1
            part = jnp.where(rmask, part, 0.0)
        acc = part if acc is None else acc + part
    return jnp.maximum(acc + b_ref[...], 0.0)


def _double_conv_kernel(x_ref, w1_ref, b1_ref, w2_ref, b2_ref, o_ref,
                        xpad1, xpad2, *, W, HW):
    """One grid step = one batch element.

    x_ref : (Cin, H*W)   bf16 input, pixels lane-dense
    w*_ref: (9, Cout, C) bf16 weights (BN scale folded), tap = ky*3 + kx
    b*_ref: (Cout, 1)    f32 folded bias
    o_ref : (Cout, H*W)  output, pixels lane-dense
    xpad* : (C, H*W + 2W + 2) bf16 flat padded scratch
    """
    Cin = x_ref.shape[0]
    Cout = o_ref.shape[0]
    pad = W + 1

    # Zero only the thin halo strips; the interior is fully rewritten below.
    xpad1[:, :pad] = jnp.zeros((Cin, pad), jnp.bfloat16)
    xpad1[:, pad + HW:] = jnp.zeros((Cin, pad), jnp.bfloat16)
    xpad2[:, :pad] = jnp.zeros((Cout, pad), jnp.bfloat16)
    xpad2[:, pad + HW:] = jnp.zeros((Cout, pad), jnp.bfloat16)

    # Column-wrap masks for the flattened (row-major) horizontal shifts.
    col = jax.lax.broadcasted_iota(jnp.int32, (1, HW), 1) % W
    lmask = col != 0
    rmask = col != (W - 1)

    # ---- stage 1: Conv3x3 (pad=1) + folded BN + ReLU ----------------------
    xpad1[:, pad:pad + HW] = x_ref[...]
    y1 = _conv3x3_stage(xpad1, w1_ref, b1_ref, W=W, HW=HW,
                        lmask=lmask, rmask=rmask)

    # Dropout2d(p=0.1) is the identity in eval mode.
    # TODO(synk): training-mode channel dropout (random channel zeroing) not implemented.

    # ---- stage 2: Conv3x3 (pad=1) + folded BN + ReLU ----------------------
    # Intermediate stays in VMEM (bf16), never written to HBM.
    xpad2[:, pad:pad + HW] = y1.astype(jnp.bfloat16)
    y2 = _conv3x3_stage(xpad2, w2_ref, b2_ref, W=W, HW=HW,
                        lmask=lmask, rmask=rmask)

    o_ref[...] = y2.astype(o_ref.dtype)


def _prep_weight(w_hwio, scale):
    """(3,3,Cin,Cout) HWIO + per-Cout BN scale -> (9, Cout, Cin) bf16."""
    kh, kw, cin, cout = w_hwio.shape
    w = (w_hwio * scale).reshape(kh * kw, cin, cout)       # fold scale in f32
    return jnp.transpose(w, (0, 2, 1)).astype(jnp.bfloat16)


def double_conv_fused(x_nchw, params):
    """Fused DoubleConv forward. x_nchw: (N, Cin, H, W) f32; returns NCHW f32."""
    N, Cin, H, W = x_nchw.shape
    Cout = params["w1"].shape[-1]
    HW = H * W
    HWpad = HW + 2 * W + 2

    # NCHW -> (N, C, H*W): pure reshape; H*W lane-dense. bf16 halves input DMA.
    x_flat = x_nchw.reshape(N, Cin, HW).astype(jnp.bfloat16)

    w1 = _prep_weight(params["w1"], params["scale1"])      # (9, Cout, Cin)
    w2 = _prep_weight(params["w2"], params["scale2"])      # (9, Cout, Cout)
    b1 = params["bias1"].reshape(Cout, 1).astype(jnp.float32)
    b2 = params["bias2"].reshape(Cout, 1).astype(jnp.float32)

    kernel = functools.partial(_double_conv_kernel, W=W, HW=HW)

    out_flat = pl.pallas_call(
        kernel,
        out_shape=jax.ShapeDtypeStruct((N, Cout, HW), x_nchw.dtype),
        grid_spec=pltpu.PrefetchScalarGridSpec(
            num_scalar_prefetch=0,
            grid=(N,),
            in_specs=[
                pl.BlockSpec((None, Cin, HW), lambda n: (n, 0, 0)),
                pl.BlockSpec((9, Cout, Cin), lambda n: (0, 0, 0)),
                pl.BlockSpec((Cout, 1), lambda n: (0, 0)),
                pl.BlockSpec((9, Cout, Cout), lambda n: (0, 0, 0)),
                pl.BlockSpec((Cout, 1), lambda n: (0, 0)),
            ],
            out_specs=pl.BlockSpec((None, Cout, HW), lambda n: (n, 0, 0)),
            scratch_shapes=[
                pltpu.VMEM((Cin, HWpad), jnp.bfloat16),
                pltpu.VMEM((Cout, HWpad), jnp.bfloat16),
            ],
        ),
        compiler_params=pltpu.CompilerParams(
            dimension_semantics=("parallel",),
        ),
    )(x_flat, w1, b1, w2, b2)

    # (N, Cout, H*W) -> (N, Cout, H, W): free reshape, already NCHW.
    return out_flat.reshape(N, Cout, H, W)


double_conv = jax.jit(double_conv_fused)


def fold_bn(conv_bias, gamma, beta, running_mean, running_var, eps=1e-5):
    """Fold conv bias + BatchNorm(running stats) into per-channel scale/bias."""
    scale = gamma / jnp.sqrt(running_var + eps)
    bias = beta + scale * (conv_bias - running_mean)
    return scale, bias


def init_params(key, in_channels, out_channels):
    k1, k2, k3, k4 = jax.random.split(key, 4)
    # Conv weights stored as HWIO (3, 3, Cin, Cout), f32 master copies.
    w1 = 0.1 * jax.random.normal(k1, (3, 3, in_channels, out_channels), jnp.float32)
    b1 = 0.1 * jax.random.normal(k2, (out_channels,), jnp.float32)
    w2 = 0.1 * jax.random.normal(k3, (3, 3, out_channels, out_channels), jnp.float32)
    b2 = 0.1 * jax.random.normal(k4, (out_channels,), jnp.float32)
    # BatchNorm2d init: gamma=1, beta=0, running_mean=0, running_var=1.
    gamma = jnp.ones((out_channels,), jnp.float32)
    beta = jnp.zeros((out_channels,), jnp.float32)
    rmean = jnp.zeros((out_channels,), jnp.float32)
    rvar = jnp.ones((out_channels,), jnp.float32)
    s1, sb1 = fold_bn(b1, gamma, beta, rmean, rvar)
    s2, sb2 = fold_bn(b2, gamma, beta, rmean, rvar)
    return dict(w1=w1, scale1=s1, bias1=sb1, w2=w2, scale2=s2, bias2=sb2)


def reference_double_conv(x_nchw, params):
    """Plain-JAX f32 reference (NHWC conv) for a sanity check."""
    x = jnp.transpose(x_nchw, (0, 2, 3, 1))

    def stage(x, w, scale, bias):
        y = jax.lax.conv_general_dilated(
            x, w, window_strides=(1, 1), padding="SAME",
            dimension_numbers=("NHWC", "HWIO", "NHWC"),
            precision=jax.lax.Precision.HIGHEST)
        return jnp.maximum(y * scale + bias, 0.0)

    y = stage(x, params["w1"], params["scale1"], params["bias1"])
    y = stage(y, params["w2"], params["scale2"], params["bias2"])
    return jnp.transpose(y, (0, 3, 1, 2))


if __name__ == "__main__":
    key = jax.random.PRNGKey(0)
    kx, kp = jax.random.split(key)

    N, Cin, Cout, H, W = 2, 4, 8, 16, 16
    x = jax.random.normal(kx, (N, Cin, H, W), jnp.float32)
    params = init_params(kp, Cin, Cout)

    out = jax.block_until_ready(double_conv(x, params))
    ref = reference_double_conv(x, params)

    assert out.shape == (N, Cout, H, W)
    # Kernel uses bf16 MXU operands (f32 accumulation); compare against the
    # f32 reference with a correspondingly loose tolerance.
    assert jnp.allclose(out, ref, atol=5e-2, rtol=5e-2)

    print("KERNEL_OK")
</pallas_src>

<mosaic_0001>
module attributes {stable_mosaic.version = 11 : i64} {
  func.func @_double_conv_kernel(%arg0: i32, %arg1: memref<1x4x256xbf16, #tpu.memory_space<vmem>>, %arg2: memref<9x8x4xbf16, #tpu.memory_space<vmem>>, %arg3: memref<8x1xf32, #tpu.memory_space<vmem>>, %arg4: memref<9x8x8xbf16, #tpu.memory_space<vmem>>, %arg5: memref<8x1xf32, #tpu.memory_space<vmem>>, %arg6: memref<1x8x256xf32, #tpu.memory_space<vmem>>, %arg7: memref<4x290xbf16, #tpu.memory_space<vmem>>, %arg8: memref<8x290xbf16, #tpu.memory_space<vmem>>) attributes {dimension_semantics = [#tpu.dimension_semantics<parallel>], iteration_bounds = array<i64: 2>, scalar_prefetch = 0 : i64, scratch_operands = 2 : i64, tpu.core_type = #tpu.core_type<tc>, window_params = [{transform_indices = @transform_0, window_bounds = array<i64: 1, 4, 256>}, {pipeline_mode = #tpu.pipeline_mode<synchronous>, transform_indices = @transform_1, window_bounds = array<i64: 9, 8, 4>}, {pipeline_mode = #tpu.pipeline_mode<synchronous>, transform_indices = @transform_2, window_bounds = array<i64: 8, 1>}, {pipeline_mode = #tpu.pipeline_mode<synchronous>, transform_indices = @transform_3, window_bounds = array<i64: 9, 8, 8>}, {pipeline_mode = #tpu.pipeline_mode<synchronous>, transform_indices = @transform_4, window_bounds = array<i64: 8, 1>}, {transform_indices = @transform_5, window_bounds = array<i64: 1, 8, 256>}]} {
    %cst = arith.constant 0.000000e+00 : bf16
    %0 = vector.broadcast %cst : bf16 to vector<4x17xbf16>
    %c0 = arith.constant 0 : index
    %c0_0 = arith.constant 0 : index
    %1 = vector.load %arg7[%c0, %c0_0] : memref<4x290xbf16, #tpu.memory_space<vmem>>, vector<4x17xbf16>
    tpu.vector_store %arg7[%c0, %c0_0], %0 {strides = array<i32>} : memref<4x290xbf16, #tpu.memory_space<vmem>>, vector<4x17xbf16>,
    %cst_1 = arith.constant 0.000000e+00 : bf16
    %2 = vector.broadcast %cst_1 : bf16 to vector<4x17xbf16>
    %c0_2 = arith.constant 0 : index
    %c273 = arith.constant 273 : index
    %3 = vector.load %arg7[%c0_2, %c273] : memref<4x290xbf16, #tpu.memory_space<vmem>>, vector<4x17xbf16>
    tpu.vector_store %arg7[%c0_2, %c273], %2 {strides = array<i32>} : memref<4x290xbf16, #tpu.memory_space<vmem>>, vector<4x17xbf16>,
    %cst_3 = arith.constant 0.000000e+00 : bf16
    %4 = vector.broadcast %cst_3 : bf16 to vector<8x17xbf16>
    %c0_4 = arith.constant 0 : index
    %c0_5 = arith.constant 0 : index
    %5 = vector.load %arg8[%c0_4, %c0_5] : memref<8x290xbf16, #tpu.memory_space<vmem>>, vector<8x17xbf16>
    tpu.vector_store %arg8[%c0_4, %c0_5], %4 {strides = array<i32>} : memref<8x290xbf16, #tpu.memory_space<vmem>>, vector<8x17xbf16>,
    %cst_6 = arith.constant 0.000000e+00 : bf16
    %6 = vector.broadcast %cst_6 : bf16 to vector<8x17xbf16>
    %c0_7 = arith.constant 0 : index
    %c273_8 = arith.constant 273 : index
    %7 = vector.load %arg8[%c0_7, %c273_8] : memref<8x290xbf16, #tpu.memory_space<vmem>>, vector<8x17xbf16>
    tpu.vector_store %arg8[%c0_7, %c273_8], %6 {strides = array<i32>} : memref<8x290xbf16, #tpu.memory_space<vmem>>, vector<8x17xbf16>,
    %8 = tpu.iota {dimensions = array<i32: 1>} : vector<1x256xi32>
    %c16_i32 = arith.constant 16 : i32
    %c0_i32 = arith.constant 0 : i32
    %9 = arith.cmpi eq, %c16_i32, %c0_i32 : i32
    %c1_i32 = arith.constant 1 : i32
    %10 = arith.select %9, %c1_i32, %c16_i32 : i32
    %11 = vector.broadcast %10 : i32 to vector<1x256xi32>
    %12 = arith.remsi %8, %11 : vector<1x256xi32>
    %c0_i32_9 = arith.constant 0 : i32
    %13 = vector.broadcast %c0_i32_9 : i32 to vector<1x256xi32>
    %14 = arith.cmpi ne, %12, %13 : vector<1x256xi32>
    %c0_i32_10 = arith.constant 0 : i32
    %15 = vector.broadcast %c0_i32_10 : i32 to vector<1x256xi32>
    %16 = arith.cmpi slt, %12, %15 : vector<1x256xi32>
    %c0_i32_11 = arith.constant 0 : i32
    %17 = arith.cmpi slt, %10, %c0_i32_11 : i32
    %18 = vector.broadcast %17 : i1 to vector<1x256xi1>
    %19 = vector.broadcast %18 : vector<1x256xi1> to vector<1x256xi1>
    %20 = arith.xori %16, %19 : vector<1x256xi1>
    %21 = arith.andi %20, %14 : vector<1x256xi1>
    %22 = vector.broadcast %10 : i32 to vector<1x256xi32>
    %23 = arith.addi %12, %22 : vector<1x256xi32>
    %24 = arith.select %21, %23, %12 : vector<1x256xi1>, vector<1x256xi32>
    %c0_i32_12 = arith.constant 0 : i32
    %25 = vector.broadcast %c0_i32_12 : i32 to vector<1x256xi32>
    %26 = arith.cmpi ne, %24, %25 : vector<1x256xi32>
    %c15_i32 = arith.constant 15 : i32
    %27 = vector.broadcast %c15_i32 : i32 to vector<1x256xi32>
    %28 = arith.cmpi ne, %24, %27 : vector<1x256xi32>
    %c0_13 = arith.constant 0 : index
    %c0_14 = arith.constant 0 : index
    %c0_15 = arith.constant 0 : index
    %29 = vector.load %arg1[%c0_13, %c0_14, %c0_15] : memref<1x4x256xbf16, #tpu.memory_space<vmem>>, vector<1x4x256xbf16>
    %30 = vector.shape_cast %29 : vector<1x4x256xbf16> to vector<4x256xbf16>
    %c0_16 = arith.constant 0 : index
    %c17 = arith.constant 17 : index
    %31 = vector.load %arg7[%c0_16, %c17] : memref<4x290xbf16, #tpu.memory_space<vmem>>, vector<4x256xbf16>
    tpu.vector_store %arg7[%c0_16, %c17], %30 {strides = array<i32>} : memref<4x290xbf16, #tpu.memory_space<vmem>>, vector<4x256xbf16>,
    %c0_17 = arith.constant 0 : index
    %c0_18 = arith.constant 0 : index
    %32 = vector.load %arg7[%c0_17, %c0_18] : memref<4x290xbf16, #tpu.memory_space<vmem>>, vector<4x256xbf16>
    %c0_19 = arith.constant 0 : index
    %c0_20 = arith.constant 0 : index
    %c0_21 = arith.constant 0 : index
    %33 = vector.load %arg2[%c0_19, %c0_20, %c0_21] : memref<9x8x4xbf16, #tpu.memory_space<vmem>>, vector<1x8x4xbf16>
    %34 = vector.shape_cast %33 : vector<1x8x4xbf16> to vector<8x4xbf16>
    %cst_22 = arith.constant dense<0.000000e+00> : vector<8x256xf32>
    %35 = tpu.matmul %34, %32, %cst_22 {dimension_numbers = #tpu.dot_dimension_numbers<[1], [0], [0], [1], [0, 0, 1, 1], [], []>} : vector<8x4xbf16>, vector<4x256xbf16>, vector<8x256xf32> -> vector<8x256xf32>
    %c0_23 = arith.constant 0 : index
    %c16 = arith.constant 16 : index
    %36 = vector.load %arg7[%c0_23, %c16] : memref<4x290xbf16, #tpu.memory_space<vmem>>, vector<4x256xbf16>
    %c3 = arith.constant 3 : index
    %c0_24 = arith.constant 0 : index
    %c0_25 = arith.constant 0 : index
    %37 = vector.load %arg2[%c3, %c0_24, %c0_25] : memref<9x8x4xbf16, #tpu.memory_space<vmem>>, vector<1x8x4xbf16>
    %38 = vector.shape_cast %37 : vector<1x8x4xbf16> to vector<8x4xbf16>
    %cst_26 = arith.constant dense<0.000000e+00> : vector<8x256xf32>
    %39 = tpu.matmul %38, %36, %cst_26 {dimension_numbers = #tpu.dot_dimension_numbers<[1], [0], [0], [1], [0, 0, 1, 1], [], []>} : vector<8x4xbf16>, vector<4x256xbf16>, vector<8x256xf32> -> vector<8x256xf32>
    %40 = arith.addf %35, %39 : vector<8x256xf32>
    %c0_27 = arith.constant 0 : index
    %c32 = arith.constant 32 : index
    %41 = vector.load %arg7[%c0_27, %c32] : memref<4x290xbf16, #tpu.memory_space<vmem>>, vector<4x256xbf16>
    %c6 = arith.constant 6 : index
    %c0_28 = arith.constant 0 : index
    %c0_29 = arith.constant 0 : index
    %42 = vector.load %arg2[%c6, %c0_28, %c0_29] : memref<9x8x4xbf16, #tpu.memory_space<vmem>>, vector<1x8x4xbf16>
    %43 = vector.shape_cast %42 : vector<1x8x4xbf16> to vector<8x4xbf16>
    %cst_30 = arith.constant dense<0.000000e+00> : vector<8x256xf32>
    %44 = tpu.matmul %43, %41, %cst_30 {dimension_numbers = #tpu.dot_dimension_numbers<[1], [0], [0], [1], [0, 0, 1, 1], [], []>} : vector<8x4xbf16>, vector<4x256xbf16>, vector<8x256xf32> -> vector<8x256xf32>
    %45 = arith.addf %40, %44 : vector<8x256xf32>
    %cst_31 = arith.constant 0.000000e+00 : f32
    %46 = vector.shape_cast %26 : vector<1x256xi1> to vector<1x256xi1>
    %47 = vector.broadcast %46 : vector<1x256xi1> to vector<8x256xi1>
    %48 = vector.broadcast %cst_31 : f32 to vector<8x256xf32>
    %49 = arith.select %47, %45, %48 : vector<8x256xi1>, vector<8x256xf32>
    %c0_32 = arith.constant 0 : index
    %c1 = arith.constant 1 : index
    %50 = vector.load %arg7[%c0_32, %c1] : memref<4x290xbf16, #tpu.memory_space<vmem>>, vector<4x256xbf16>
    %c1_33 = arith.constant 1 : index
    %c0_34 = arith.constant 0 : index
    %c0_35 = arith.constant 0 : index
    %51 = vector.load %arg2[%c1_33, %c0_34, %c0_35] : memref<9x8x4xbf16, #tpu.memory_space<vmem>>, vector<1x8x4xbf16>
    %52 = vector.shape_cast %51 : vector<1x8x4xbf16> to vector<8x4xbf16>
    %cst_36 = arith.constant dense<0.000000e+00> : vector<8x256xf32>
    %53 = tpu.matmul %52, %50, %cst_36 {dimension_numbers = #tpu.dot_dimension_numbers<[1], [0], [0], [1], [0, 0, 1, 1], [], []>} : vector<8x4xbf16>, vector<4x256xbf16>, vector<8x256xf32> -> vector<8x256xf32>
    %c0_37 = arith.constant 0 : index
    %c17_38 = arith.constant 17 : index
    %54 = vector.load %arg7[%c0_37, %c17_38] : memref<4x290xbf16, #tpu.memory_space<vmem>>, vector<4x256xbf16>
    %c4 = arith.constant 4 : index
    %c0_39 = arith.constant 0 : index
    %c0_40 = arith.constant 0 : index
    %55 = vector.load %arg2[%c4, %c0_39, %c0_40] : memref<9x8x4xbf16, #tpu.memory_space<vmem>>, vector<1x8x4xbf16>
    %56 = vector.shape_cast %55 : vector<1x8x4xbf16> to vector<8x4xbf16>
    %cst_41 = arith.constant dense<0.000000e+00> : vector<8x256xf32>
    %57 = tpu.matmul %56, %54, %cst_41 {dimension_numbers = #tpu.dot_dimension_numbers<[1], [0], [0], [1], [0, 0, 1, 1], [], []>} : vector<8x4xbf16>, vector<4x256xbf16>, vector<8x256xf32> -> vector<8x256xf32>
    %58 = arith.addf %53, %57 : vector<8x256xf32>
    %c0_42 = arith.constant 0 : index
    %c33 = arith.constant 33 : index
    %59 = vector.load %arg7[%c0_42, %c33] : memref<4x290xbf16, #tpu.memory_space<vmem>>, vector<4x256xbf16>
    %c7 = arith.constant 7 : index
    %c0_43 = arith.constant 0 : index
    %c0_44 = arith.constant 0 : index
    %60 = vector.load %arg2[%c7, %c0_43, %c0_44] : memref<9x8x4xbf16, #tpu.memory_space<vmem>>, vector<1x8x4xbf16>
    %61 = vector.shape_cast %60 : vector<1x8x4xbf16> to vector<8x4xbf16>
    %cst_45 = arith.constant dense<0.000000e+00> : vector<8x256xf32>
    %62 = tpu.matmul %61, %59, %cst_45 {dimension_numbers = #tpu.dot_dimension_numbers<[1], [0], [0], [1], [0, 0, 1, 1], [], []>} : vector<8x4xbf16>, vector<4x256xbf16>, vector<8x256xf32> -> vector<8x256xf32>
    %63 = arith.addf %58, %62 : vector<8x256xf32>
    %64 = arith.addf %49, %63 : vector<8x256xf32>
    %c0_46 = arith.constant 0 : index
    %c2 = arith.constant 2 : index
    %65 = vector.load %arg7[%c0_46, %c2] : memref<4x290xbf16, #tpu.memory_space<vmem>>, vector<4x256xbf16>
    %c2_47 = arith.constant 2 : index
    %c0_48 = arith.constant 0 : index
    %c0_49 = arith.constant 0 : index
    %66 = vector.load %arg2[%c2_47, %c0_48, %c0_49] : memref<9x8x4xbf16, #tpu.memory_space<vmem>>, vector<1x8x4xbf16>
    %67 = vector.shape_cast %66 : vector<1x8x4xbf16> to vector<8x4xbf16>
    %cst_50 = arith.constant dense<0.000000e+00> : vector<8x256xf32>
    %68 = tpu.matmul %67, %65, %cst_50 {dimension_numbers = #tpu.dot_dimension_numbers<[1], [0], [0], [1], [0, 0, 1, 1], [], []>} : vector<8x4xbf16>, vector<4x256xbf16>, vector<8x256xf32> -> vector<8x256xf32>
    %c0_51 = arith.constant 0 : index
    %c18 = arith.constant 18 : index
    %69 = vector.load %arg7[%c0_51, %c18] : memref<4x290xbf16, #tpu.memory_space<vmem>>, vector<4x256xbf16>
    %c5 = arith.constant 5 : index
    %c0_52 = arith.constant 0 : index
    %c0_53 = arith.constant 0 : index
    %70 = vector.load %arg2[%c5, %c0_52, %c0_53] : memref<9x8x4xbf16, #tpu.memory_space<vmem>>, vector<1x8x4xbf16>
    %71 = vector.shape_cast %70 : vector<1x8x4xbf16> to vector<8x4xbf16>
    %cst_54 = arith.constant dense<0.000000e+00> : vector<8x256xf32>
    %72 = tpu.matmul %71, %69, %cst_54 {dimension_numbers = #tpu.dot_dimension_numbers<[1], [0], [0], [1], [0, 0, 1, 1], [], []>} : vector<8x4xbf16>, vector<4x256xbf16>, vector<8x256xf32> -> vector<8x256xf32>
    %73 = arith.addf %68, %72 : vector<8x256xf32>
    %c0_55 = arith.constant 0 : index
    %c34 = arith.constant 34 : index
    %74 = vector.load %arg7[%c0_55, %c34] : memref<4x290xbf16, #tpu.memory_space<vmem>>, vector<4x256xbf16>
    %c8 = arith.constant 8 : index
    %c0_56 = arith.constant 0 : index
    %c0_57 = arith.constant 0 : index
    %75 = vector.load %arg2[%c8, %c0_56, %c0_57] : memref<9x8x4xbf16, #tpu.memory_space<vmem>>, vector<1x8x4xbf16>
    %76 = vector.shape_cast %75 : vector<1x8x4xbf16> to vector<8x4xbf16>
    %cst_58 = arith.constant dense<0.000000e+00> : vector<8x256xf32>
    %77 = tpu.matmul %76, %74, %cst_58 {dimension_numbers = #tpu.dot_dimension_numbers<[1], [0], [0], [1], [0, 0, 1, 1], [], []>} : vector<8x4xbf16>, vector<4x256xbf16>, vector<8x256xf32> -> vector<8x256xf32>
    %78 = arith.addf %73, %77 : vector<8x256xf32>
    %cst_59 = arith.constant 0.000000e+00 : f32
    %79 = vector.shape_cast %28 : vector<1x256xi1> to vector<1x256xi1>
    %80 = vector.broadcast %79 : vector<1x256xi1> to vector<8x256xi1>
    %81 = vector.broadcast %cst_59 : f32 to vector<8x256xf32>
    %82 = arith.select %80, %78, %81 : vector<8x256xi1>, vector<8x256xf32>
    %83 = arith.addf %64, %82 : vector<8x256xf32>
    %c0_60 = arith.constant 0 : index
    %c0_61 = arith.constant 0 : index
    %84 = vector.load %arg3[%c0_60, %c0_61] : memref<8x1xf32, #tpu.memory_space<vmem>>, vector<8x1xf32>
    %85 = vector.broadcast %84 : vector<8x1xf32> to vector<8x256xf32>
    %86 = arith.addf %83, %85 : vector<8x256xf32>
    %cst_62 = arith.constant 0.000000e+00 : f32
    %87 = vector.broadcast %cst_62 : f32 to vector<8x256xf32>
    %88 = arith.maximumf %86, %87 : vector<8x256xf32>
    %89 = arith.truncf %88 : vector<8x256xf32> to vector<8x256xbf16>
    %c0_63 = arith.constant 0 : index
    %c17_64 = arith.constant 17 : index
    %90 = vector.load %arg8[%c0_63, %c17_64] : memref<8x290xbf16, #tpu.memory_space<vmem>>, vector<8x256xbf16>
    tpu.vector_store %arg8[%c0_63, %c17_64], %89 {strides = array<i32>} : memref<8x290xbf16, #tpu.memory_space<vmem>>, vector<8x256xbf16>,
    %c0_65 = arith.constant 0 : index
    %c0_66 = arith.constant 0 : index
    %91 = vector.load %arg8[%c0_65, %c0_66] : memref<8x290xbf16, #tpu.memory_space<vmem>>, vector<8x256xbf16>
    %c0_67 = arith.constant 0 : index
    %c0_68 = arith.constant 0 : index
    %c0_69 = arith.constant 0 : index
    %92 = vector.load %arg4[%c0_67, %c0_68, %c0_69] : memref<9x8x8xbf16, #tpu.memory_space<vmem>>, vector<1x8x8xbf16>
    %93 = vector.shape_cast %92 : vector<1x8x8xbf16> to vector<8x8xbf16>
    %cst_70 = arith.constant dense<0.000000e+00> : vector<8x256xf32>
    %94 = tpu.matmul %93, %91, %cst_70 {dimension_numbers = #tpu.dot_dimension_numbers<[1], [0], [0], [1], [0, 0, 1, 1], [], []>} : vector<8x8xbf16>, vector<8x256xbf16>, vector<8x256xf32> -> vector<8x256xf32>
    %c0_71 = arith.constant 0 : index
    %c16_72 = arith.constant 16 : index
    %95 = vector.load %arg8[%c0_71, %c16_72] : memref<8x290xbf16, #tpu.memory_space<vmem>>, vector<8x256xbf16>
    %c3_73 = arith.constant 3 : index
    %c0_74 = arith.constant 0 : index
    %c0_75 = arith.constant 0 : index
    %96 = vector.load %arg4[%c3_73, %c0_74, %c0_75] : memref<9x8x8xbf16, #tpu.memory_space<vmem>>, vector<1x8x8xbf16>
    %97 = vector.shape_cast %96 : vector<1x8x8xbf16> to vector<8x8xbf16>
    %cst_76 = arith.constant dense<0.000000e+00> : vector<8x256xf32>
    %98 = tpu.matmul %97, %95, %cst_76 {dimension_numbers = #tpu.dot_dimension_numbers<[1], [0], [0], [1], [0, 0, 1, 1], [], []>} : vector<8x8xbf16>, vector<8x256xbf16>, vector<8x256xf32> -> vector<8x256xf32>
    %99 = arith.addf %94, %98 : vector<8x256xf32>
    %c0_77 = arith.constant 0 : index
    %c32_78 = arith.constant 32 : index
    %100 = vector.load %arg8[%c0_77, %c32_78] : memref<8x290xbf16, #tpu.memory_space<vmem>>, vector<8x256xbf16>
    %c6_79 = arith.constant 6 : index
    %c0_80 = arith.constant 0 : index
    %c0_81 = arith.constant 0 : index
    %101 = vector.load %arg4[%c6_79, %c0_80, %c0_81] : memref<9x8x8xbf16, #tpu.memory_space<vmem>>, vector<1x8x8xbf16>
    %102 = vector.shape_cast %101 : vector<1x8x8xbf16> to vector<8x8xbf16>
    %cst_82 = arith.constant dense<0.000000e+00> : vector<8x256xf32>
    %103 = tpu.matmul %102, %100, %cst_82 {dimension_numbers = #tpu.dot_dimension_numbers<[1], [0], [0], [1], [0, 0, 1, 1], [], []>} : vector<8x8xbf16>, vector<8x256xbf16>, vector<8x256xf32> -> vector<8x256xf32>
    %104 = arith.addf %99, %103 : vector<8x256xf32>
    %cst_83 = arith.constant 0.000000e+00 : f32
    %105 = vector.shape_cast %26 : vector<1x256xi1> to vector<1x256xi1>
    %106 = vector.broadcast %105 : vector<1x256xi1> to vector<8x256xi1>
    %107 = vector.broadcast %cst_83 : f32 to vector<8x256xf32>
    %108 = arith.select %106, %104, %107 : vector<8x256xi1>, vector<8x256xf32>
    %c0_84 = arith.constant 0 : index
    %c1_85 = arith.constant 1 : index
    %109 = vector.load %arg8[%c0_84, %c1_85] : memref<8x290xbf16, #tpu.memory_space<vmem>>, vector<8x256xbf16>
    %c1_86 = arith.constant 1 : index
    %c0_87 = arith.constant 0 : index
    %c0_88 = arith.constant 0 : index
    %110 = vector.load %arg4[%c1_86, %c0_87, %c0_88] : memref<9x8x8xbf16, #tpu.memory_space<vmem>>, vector<1x8x8xbf16>
    %111 = vector.shape_cast %110 : vector<1x8x8xbf16> to vector<8x8xbf16>
    %cst_89 = arith.constant dense<0.000000e+00> : vector<8x256xf32>
    %112 = tpu.matmul %111, %109, %cst_89 {dimension_numbers = #tpu.dot_dimension_numbers<[1], [0], [0], [1], [0, 0, 1, 1], [], []>} : vector<8x8xbf16>, vector<8x256xbf16>, vector<8x256xf32> -> vector<8x256xf32>
    %c0_90 = arith.constant 0 : index
    %c17_91 = arith.constant 17 : index
    %113 = vector.load %arg8[%c0_90, %c17_91] : memref<8x290xbf16, #tpu.memory_space<vmem>>, vector<8x256xbf16>
    %c4_92 = arith.constant 4 : index
    %c0_93 = arith.constant 0 : index
    %c0_94 = arith.constant 0 : index
    %114 = vector.load %arg4[%c4_92, %c0_93, %c0_94] : memref<9x8x8xbf16, #tpu.memory_space<vmem>>, vector<1x8x8xbf16>
    %115 = vector.shape_cast %114 : vector<1x8x8xbf16> to vector<8x8xbf16>
    %cst_95 = arith.constant dense<0.000000e+00> : vector<8x256xf32>
    %116 = tpu.matmul %115, %113, %cst_95 {dimension_numbers = #tpu.dot_dimension_numbers<[1], [0], [0], [1], [0, 0, 1, 1], [], []>} : vector<8x8xbf16>, vector<8x256xbf16>, vector<8x256xf32> -> vector<8x256xf32>
    %117 = arith.addf %112, %116 : vector<8x256xf32>
    %c0_96 = arith.constant 0 : index
    %c33_97 = arith.constant 33 : index
    %118 = vector.load %arg8[%c0_96, %c33_97] : memref<8x290xbf16, #tpu.memory_space<vmem>>, vector<8x256xbf16>
    %c7_98 = arith.constant 7 : index
    %c0_99 = arith.constant 0 : index
    %c0_100 = arith.constant 0 : index
    %119 = vector.load %arg4[%c7_98, %c0_99, %c0_100] : memref<9x8x8xbf16, #tpu.memory_space<vmem>>, vector<1x8x8xbf16>
    %120 = vector.shape_cast %119 : vector<1x8x8xbf16> to vector<8x8xbf16>
    %cst_101 = arith.constant dense<0.000000e+00> : vector<8x256xf32>
    %121 = tpu.matmul %120, %118, %cst_101 {dimension_numbers = #tpu.dot_dimension_numbers<[1], [0], [0], [1], [0, 0, 1, 1], [], []>} : vector<8x8xbf16>, vector<8x256xbf16>, vector<8x256xf32> -> vector<8x256xf32>
    %122 = arith.addf %117, %121 : vector<8x256xf32>
    %123 = arith.addf %108, %122 : vector<8x256xf32>
    %c0_102 = arith.constant 0 : index
    %c2_103 = arith.constant 2 : index
    %124 = vector.load %arg8[%c0_102, %c2_103] : memref<8x290xbf16, #tpu.memory_space<vmem>>, vector<8x256xbf16>
    %c2_104 = arith.constant 2 : index
    %c0_105 = arith.constant 0 : index
    %c0_106 = arith.constant 0 : index
    %125 = vector.load %arg4[%c2_104, %c0_105, %c0_106] : memref<9x8x8xbf16, #tpu.memory_space<vmem>>, vector<1x8x8xbf16>
    %126 = vector.shape_cast %125 : vector<1x8x8xbf16> to vector<8x8xbf16>
    %cst_107 = arith.constant dense<0.000000e+00> : vector<8x256xf32>
    %127 = tpu.matmul %126, %124, %cst_107 {dimension_numbers = #tpu.dot_dimension_numbers<[1], [0], [0], [1], [0, 0, 1, 1], [], []>} : vector<8x8xbf16>, vector<8x256xbf16>, vector<8x256xf32> -> vector<8x256xf32>
    %c0_108 = arith.constant 0 : index
    %c18_109 = arith.constant 18 : index
    %128 = vector.load %arg8[%c0_108, %c18_109] : memref<8x290xbf16, #tpu.memory_space<vmem>>, vector<8x256xbf16>
    %c5_110 = arith.constant 5 : index
    %c0_111 = arith.constant 0 : index
    %c0_112 = arith.constant 0 : index
    %129 = vector.load %arg4[%c5_110, %c0_111, %c0_112] : memref<9x8x8xbf16, #tpu.memory_space<vmem>>, vector<1x8x8xbf16>
    %130 = vector.shape_cast %129 : vector<1x8x8xbf16> to vector<8x8xbf16>
    %cst_113 = arith.constant dense<0.000000e+00> : vector<8x256xf32>
    %131 = tpu.matmul %130, %128, %cst_113 {dimension_numbers = #tpu.dot_dimension_numbers<[1], [0], [0], [1], [0, 0, 1, 1], [], []>} : vector<8x8xbf16>, vector<8x256xbf16>, vector<8x256xf32> -> vector<8x256xf32>
    %132 = arith.addf %127, %131 : vector<8x256xf32>
    %c0_114 = arith.constant 0 : index
    %c34_115 = arith.constant 34 : index
    %133 = vector.load %arg8[%c0_114, %c34_115] : memref<8x290xbf16, #tpu.memory_space<vmem>>, vector<8x256xbf16>
    %c8_116 = arith.constant 8 : index
    %c0_117 = arith.constant 0 : index
    %c0_118 = arith.constant 0 : index
    %134 = vector.load %arg4[%c8_116, %c0_117, %c0_118] : memref<9x8x8xbf16, #tpu.memory_space<vmem>>, vector<1x8x8xbf16>
    %135 = vector.shape_cast %134 : vector<1x8x8xbf16> to vector<8x8xbf16>
    %cst_119 = arith.constant dense<0.000000e+00> : vector<8x256xf32>
    %136 = tpu.matmul %135, %133, %cst_119 {dimension_numbers = #tpu.dot_dimension_numbers<[1], [0], [0], [1], [0, 0, 1, 1], [], []>} : vector<8x8xbf16>, vector<8x256xbf16>, vector<8x256xf32> -> vector<8x256xf32>
    %137 = arith.addf %132, %136 : vector<8x256xf32>
    %cst_120 = arith.constant 0.000000e+00 : f32
    %138 = vector.shape_cast %28 : vector<1x256xi1> to vector<1x256xi1>
    %139 = vector.broadcast %138 : vector<1x256xi1> to vector<8x256xi1>
    %140 = vector.broadcast %cst_120 : f32 to vector<8x256xf32>
    %141 = arith.select %139, %137, %140 : vector<8x256xi1>, vector<8x256xf32>
    %142 = arith.addf %123, %141 : vector<8x256xf32>
    %c0_121 = arith.constant 0 : index
    %c0_122 = arith.constant 0 : index
    %143 = vector.load %arg5[%c0_121, %c0_122] : memref<8x1xf32, #tpu.memory_space<vmem>>, vector<8x1xf32>
    %144 = vector.broadcast %143 : vector<8x1xf32> to vector<8x256xf32>
    %145 = arith.addf %142, %144 : vector<8x256xf32>
    %cst_123 = arith.constant 0.000000e+00 : f32
    %146 = vector.broadcast %cst_123 : f32 to vector<8x256xf32>
    %147 = arith.maximumf %145, %146 : vector<8x256xf32>
    %c0_124 = arith.constant 0 : index
    %c0_125 = arith.constant 0 : index
    %c0_126 = arith.constant 0 : index
    %148 = vector.load %arg6[%c0_124, %c0_125, %c0_126] : memref<1x8x256xf32, #tpu.memory_space<vmem>>, vector<1x8x256xf32>
    %149 = vector.shape_cast %148 : vector<1x8x256xf32> to vector<8x256xf32>
    %150 = vector.shape_cast %147 : vector<8x256xf32> to vector<1x8x256xf32>
    tpu.vector_store %arg6[%c0_124, %c0_125, %c0_126], %150 {strides = array<i32>} : memref<1x8x256xf32, #tpu.memory_space<vmem>>, vector<1x8x256xf32>,
    return
  }
  func.func @transform_0(%arg0: i32) -> (i32, i32, i32) {
    %c0_i32 = arith.constant 0 : i32
    %c0_i32_0 = arith.constant 0 : i32
    %c0_i32_1 = arith.constant 0 : i32
    return %arg0, %c0_i32, %c0_i32_0 : i32, i32, i32
  }
  func.func @transform_1(%arg0: i32) -> (i32, i32, i32) {
    %c0_i32 = arith.constant 0 : i32
    %c0_i32_0 = arith.constant 0 : i32
    %c0_i32_1 = arith.constant 0 : i32
    %c0_i32_2 = arith.constant 0 : i32
    return %c0_i32, %c0_i32_0, %c0_i32_1 : i32, i32, i32
  }
  func.func @transform_2(%arg0: i32) -> (i32, i32) {
    %c0_i32 = arith.constant 0 : i32
    %c0_i32_0 = arith.constant 0 : i32
    %c0_i32_1 = arith.constant 0 : i32
    return %c0_i32, %c0_i32_0 : i32, i32
  }
  func.func @transform_3(%arg0: i32) -> (i32, i32, i32) {
    %c0_i32 = arith.constant 0 : i32
    %c0_i32_0 = arith.constant 0 : i32
    %c0_i32_1 = arith.constant 0 : i32
    %c0_i32_2 = arith.constant 0 : i32
    return %c0_i32, %c0_i32_0, %c0_i32_1 : i32, i32, i32
  }
  func.func @transform_4(%arg0: i32) -> (i32, i32) {
    %c0_i32 = arith.constant 0 : i32
    %c0_i32_0 = arith.constant 0 : i32
    %c0_i32_1 = arith.constant 0 : i32
    return %c0_i32, %c0_i32_0 : i32, i32
  }
  func.func @transform_5(%arg0: i32) -> (i32, i32, i32) {
    %c0_i32 = arith.constant 0 : i32
    %c0_i32_0 = arith.constant 0 : i32
    %c0_i32_1 = arith.constant 0 : i32
    return %arg0, %c0_i32, %c0_i32_0 : i32, i32, i32
  }
}

</mosaic_0001>

<llo_original>
// kernel: double_conv_fused.1
$region0: #{double_conv_fused.1}
  #allocation0 [shape = 'u32[]', space=smem, size = 0x4, offset = 0x4, fixed_abs, tag = 'smem constant byte address 0x4 - core index']
  #allocation1 [shape = 'u32[144,128]{1,0:T(1,128)}', space=vmem, size = 0x12000, scoped, tag = 'internal scratch']
  #allocation2 [shape = 'bf16[4,290]{1,0:T(4,128)(2,1)}', space=vmem, size = 0xc00, scoped, tag = 'scratch operand']
  #allocation3 [shape = 'bf16[8,290]{1,0:T(8,128)(2,1)}', space=vmem, size = 0x1800, scoped, tag = 'scratch operand']
  %s0 = inlined_call_operand.vmem [shape: bf16[2,4,256], index: 0, kind: input, shape index: {}]
  %s1 = inlined_call_operand.vmem [shape: bf16[9,8,4], index: 1, kind: input, shape index: {}]
  %s2 = inlined_call_operand.vmem [shape: f32[8,1], index: 2, kind: input, shape index: {}]
  %s3 = inlined_call_operand.vmem [shape: bf16[9,8,8], index: 3, kind: input, shape index: {}]
  %s4 = inlined_call_operand.vmem [shape: f32[8,1], index: 4, kind: input, shape index: {}]
  %s5 = inlined_call_operand.vmem [shape: f32[2,8,256], index: 5, kind: output, shape index: {}]
  %s6 = sld [smem:[#allocation0]]
  $region53: #{double_conv_fused.1} parent=0
    _
  %s8 = ssub.s32 1, %s6
  %s9 = scalar_select 0, %s8, %s6
  loop: start=0, step=1, limit=4
  $region2: #{double_conv_fused.1} parent=0 // loop_pre_header
    _
  $region3: #{double_conv_fused.1} parent=0 // loop_header
    %s11 = sphi 0, %s15
    %p12 = scmp.ge.s32.totalorder %s11, 4
    %s21 = sphi 0, %s23
    %s24 = sphi 0, %s21
    %s25 = sphi 0, %s24
    %s41 = sphi 0, %s25
    %s45 = sphi 0, %s45
    %s47 = sphi 0, %s45
    %s48 = sphi 0, %s47
    %s62 = sphi 0, %s48
    %s66 = sphi 0, %s66
    %s68 = sphi 0, %s66
    %s69 = sphi 0, %s68
    %s83 = sphi 0, %s69
    %s87 = sphi 0, %s87
    %s89 = sphi 0, %s87
    %s90 = sphi 0, %s89
    %s104 = sphi 0, %s90
    %s108 = sphi 0, %s108
    %s110 = sphi 0, %s108
    %s111 = sphi 0, %s110
    %s125 = sphi 0, %s111
    %s131 = sphi 0, %s133
    %s134 = sphi 0, %s131
    %s135 = sphi 0, %s134
    %s151 = sphi 0, %s135
  $region4: #{double_conv_fused.1} parent=0 // loop_header_branch
    %14 = sbr.rel (%p12) target = $region8
  $region5: #{double_conv_fused.1} parent=0 // loop_body
    %s16 = ssub.s32 %s11, 1
    %s17 = ssub.s32 %s11, 2
    %s18 = sadd.s32 %s11, 1
    %s19 = ssub.s32 %s11, %s18
    %p20 = scmp.eq.s32.totalorder %s19, 0
    %s22 = sadd.s32 %s21, 1
    %s23 = scalar_select %p20, %s21, %s22
    %p26 = pneg %p20
    %p27 = scmp.eq.s32.totalorder %s11, 1
    %p28 = por %p26, %p27
    %p29 = scmp.ne.s32.totalorder %s21, %s24
    %p30 = scmp.eq.s32.totalorder %s11, 0
    %p31 = por %p29, %p30
    %p32 = scmp.ne.s32.totalorder %s21, %s24
    %p33 = scmp.eq.s32.totalorder %s16, 1
    %p34 = por %p32, %p33
    %p35 = scmp.ne.s32.totalorder %s24, %s25
    %p36 = scmp.eq.s32.totalorder %s16, 0
    %p37 = por %p35, %p36
    %p38 = scmp.ne.s32.totalorder %s24, %s25
    %p39 = scmp.eq.s32.totalorder %s17, 1
    %p40 = por %p38, %p39
    %p42 = scmp.ne.s32.totalorder %s25, %s41
    %p43 = scmp.eq.s32.totalorder %s17, 0
    %p44 = por %p42, %p43
    %s46 = sadd.s32 %s45, 1
    %p49 = scmp.eq.s32.totalorder %s11, 1
    %p50 = scmp.ne.s32.totalorder %s45, %s47
    %p51 = scmp.eq.s32.totalorder %s11, 0
    %p52 = por %p50, %p51
    %p53 = scmp.ne.s32.totalorder %s45, %s47
    %p54 = scmp.eq.s32.totalorder %s16, 1
    %p55 = por %p53, %p54
    %p56 = scmp.ne.s32.totalorder %s47, %s48
    %p57 = scmp.eq.s32.totalorder %s16, 0
    %p58 = por %p56, %p57
    %p59 = scmp.ne.s32.totalorder %s47, %s48
    %p60 = scmp.eq.s32.totalorder %s17, 1
    %p61 = por %p59, %p60
    %p63 = scmp.ne.s32.totalorder %s48, %s62
    %p64 = scmp.eq.s32.totalorder %s17, 0
    %p65 = por %p63, %p64
    %s67 = sadd.s32 %s66, 1
    %p70 = scmp.eq.s32.totalorder %s11, 1
    %p71 = scmp.ne.s32.totalorder %s66, %s68
    %p72 = scmp.eq.s32.totalorder %s11, 0
    %p73 = por %p71, %p72
    %p74 = scmp.ne.s32.totalorder %s66, %s68
    %p75 = scmp.eq.s32.totalorder %s16, 1
    %p76 = por %p74, %p75
    %p77 = scmp.ne.s32.totalorder %s68, %s69
    %p78 = scmp.eq.s32.totalorder %s16, 0
    %p79 = por %p77, %p78
    %p80 = scmp.ne.s32.totalorder %s68, %s69
    %p81 = scmp.eq.s32.totalorder %s17, 1
    %p82 = por %p80, %p81
    %p84 = scmp.ne.s32.totalorder %s69, %s83
    %p85 = scmp.eq.s32.totalorder %s17, 0
    %p86 = por %p84, %p85
    %s88 = sadd.s32 %s87, 1
    %p91 = scmp.eq.s32.totalorder %s11, 1
    %p92 = scmp.ne.s32.totalorder %s87, %s89
    %p93 = scmp.eq.s32.totalorder %s11, 0
    %p94 = por %p92, %p93
    %p95 = scmp.ne.s32.totalorder %s87, %s89
    %p96 = scmp.eq.s32.totalorder %s16, 1
    %p97 = por %p95, %p96
    %p98 = scmp.ne.s32.totalorder %s89, %s90
    %p99 = scmp.eq.s32.totalorder %s16, 0
    %p100 = por %p98, %p99
    %p101 = scmp.ne.s32.totalorder %s89, %s90
    %p102 = scmp.eq.s32.totalorder %s17, 1
    %p103 = por %p101, %p102
    %p105 = scmp.ne.s32.totalorder %s90, %s104
    %p106 = scmp.eq.s32.totalorder %s17, 0
    %p107 = por %p105, %p106
    %s109 = sadd.s32 %s108, 1
    %p112 = scmp.eq.s32.totalorder %s11, 1
    %p113 = scmp.ne.s32.totalorder %s108, %s110
    %p114 = scmp.eq.s32.totalorder %s11, 0
    %p115 = por %p113, %p114
    %p116 = scmp.ne.s32.totalorder %s108, %s110
    %p117 = scmp.eq.s32.totalorder %s16, 1
    %p118 = por %p116, %p117
    %p119 = scmp.ne.s32.totalorder %s110, %s111
    %p120 = scmp.eq.s32.totalorder %s16, 0
    %p121 = por %p119, %p120
    %p122 = scmp.ne.s32.totalorder %s110, %s111
    %p123 = scmp.eq.s32.totalorder %s17, 1
    %p124 = por %p122, %p123
    %p126 = scmp.ne.s32.totalorder %s111, %s125
    %p127 = scmp.eq.s32.totalorder %s17, 0
    %p128 = por %p126, %p127
    %s129 = ssub.s32 %s11, %s18
    %p130 = scmp.eq.s32.totalorder %s129, 0
    %s132 = sadd.s32 %s131, 1
    %s133 = scalar_select %p130, %s131, %s132
    %p136 = pneg %p130
    %p137 = scmp.eq.s32.totalorder %s11, 1
    %p138 = por %p136, %p137
    %p139 = scmp.ne.s32.totalorder %s131, %s134
    %p140 = scmp.eq.s32.totalorder %s11, 0
    %p141 = por %p139, %p140
    %p142 = scmp.ne.s32.totalorder %s131, %s134
    %p143 = scmp.eq.s32.totalorder %s16, 1
    %p144 = por %p142, %p143
    %p145 = scmp.ne.s32.totalorder %s134, %s135
    %p146 = scmp.eq.s32.totalorder %s16, 0
    %p147 = por %p145, %p146
    %p148 = scmp.ne.s32.totalorder %s134, %s135
    %p149 = scmp.eq.s32.totalorder %s17, 1
    %p150 = por %p148, %p149
    %p152 = scmp.ne.s32.totalorder %s135, %s151
    %p153 = scmp.eq.s32.totalorder %s17, 0
    %p154 = por %p152, %p153
    %p155 = scmp.le.s32.totalorder 1, %s11
    %p156 = scmp.lt.s32.totalorder %s11, 3
    %p157 = pnand %p155, %p156
    %p158 = pneg %p157
    // Predicated region
    $region9: #{double_conv_fused.1} parent=5 // pred_check
      _
    $region10: #{double_conv_fused.1} parent=5 // pred_check_branch
      %160 = sbr.rel (%p157) target = $region12
    $region11: #{double_conv_fused.1} parent=5 // pred_region
      %s161 = ssub.s32 %s11, 1
      // Predicated region
      $region13: #{double_conv_fused.1} parent=11 // pred_check
        %p162 = pneg %p58
      $region14: #{double_conv_fused.1} parent=11 // pred_check_branch
        %164 = sbr.rel (%p162) target = $region16
      $region15: #{double_conv_fused.1} parent=11 // pred_region
        _
      $region16: #{double_conv_fused.1} parent=11 // pred_fallthru
        _
      // Predicated region
      $region17: #{double_conv_fused.1} parent=11 // pred_check
        %p165 = pneg %p79
      $region18: #{double_conv_fused.1} parent=11 // pred_check_branch
        %167 = sbr.rel (%p165) target = $region20
      $region19: #{double_conv_fused.1} parent=11 // pred_region
        _
      $region20: #{double_conv_fused.1} parent=11 // pred_fallthru
        _
      // Predicated region
      $region21: #{double_conv_fused.1} parent=11 // pred_check
        %p168 = pneg %p100
      $region22: #{double_conv_fused.1} parent=11 // pred_check_branch
        %170 = sbr.rel (%p168) target = $region24
      $region23: #{double_conv_fused.1} parent=11 // pred_region
        _
      $region24: #{double_conv_fused.1} parent=11 // pred_fallthru
        _
      // Predicated region
      $region25: #{double_conv_fused.1} parent=11 // pred_check
        %p171 = pneg %p121
      $region26: #{double_conv_fused.1} parent=11 // pred_check_branch
        %173 = sbr.rel (%p171) target = $region28
      $region27: #{double_conv_fused.1} parent=11 // pred_region
        _
      $region28: #{double_conv_fused.1} parent=11 // pred_fallthru
        _
    $region12: #{double_conv_fused.1} parent=5 // pred_fallthru
      _
    %p174 = scmp.lt.s32.totalorder %s11, 2
    // Predicated region
    $region29: #{double_conv_fused.1} parent=5 // pred_check
      %p175 = pneg %p174
    $region30: #{double_conv_fused.1} parent=5 // pred_check_branch
      %177 = sbr.rel (%p175) target = $region32
    $region31: #{double_conv_fused.1} parent=5 // pred_region
      // Predicated region
      $region33: #{double_conv_fused.1} parent=31 // pred_check
        %p178 = pneg %p31
      $region34: #{double_conv_fused.1} parent=31 // pred_check_branch
        %180 = sbr.rel (%p178) target = $region36
      $region35: #{double_conv_fused.1} parent=31 // pred_region
        %p181 = scmp.lt.s32.totalorder %s11, 1
        %s182 = scalar_select %p181, %s11, 1
        %s183 = smul.addr %s182, 2
        %s184 = smul.addr %s183, 2
        %s185 = scalar_lea.vmem %s0, %s184
      $region36: #{double_conv_fused.1} parent=31 // pred_fallthru
        _
    $region32: #{double_conv_fused.1} parent=5 // pred_fallthru
      _
    %p186 = scmp.le.s32.totalorder 1, %s11
    %p187 = scmp.lt.s32.totalorder %s11, 3
    %p188 = pnand %p186, %p187
    %p189 = pneg %p188
    // Predicated region
    $region37: #{double_conv_fused.1} parent=5 // pred_check
      _
    $region38: #{double_conv_fused.1} parent=5 // pred_check_branch
      %191 = sbr.rel (%p188) target = $region40
    $region39: #{double_conv_fused.1} parent=5 // pred_region
      %s192 = ssub.s32 %s11, 1
      %p193 = scmp.lt.s32.totalorder %s16, 1
      %s194 = scalar_select %p193, %s16, 1
      %s195 = smul.addr %s194, 2
      %s196 = smul.addr %s195, 2
      %s197 = scalar_lea.vmem %s0, %s196
      %p198 = pneg %p37
      %p199 = pneg %p34
      %p200 = pneg %p58
      %p201 = pneg %p55
      %p202 = pneg %p79
      %p203 = pneg %p76
      %p204 = pneg %p100
      %p205 = pneg %p97
      %p206 = pneg %p121
      %p207 = pneg %p118
      %p208 = pneg %p147
      %p209 = pneg %p144
      %p210 = scmp.lt.s32.totalorder %s16, 1
      %s211 = scalar_select %p210, %s16, 1
      %s212 = smul.addr %s211, 2
      %s213 = smul.addr %s212, 8
      %s214 = scalar_lea.vmem %s5, %s213
      %p215 = scmp.lt.s32.totalorder %s16, 1
      %s216 = scalar_select %p215, %s16, 1
      %s217 = smul.addr %s216, 2
      %s218 = smul.addr %s217, 2
      %s219 = scalar_lea.vmem %s0, %s218
      %p220 = scmp.lt.s32.totalorder %s16, 1
      %s221 = scalar_select %p220, %s16, 1
      %s222 = smul.addr %s221, 2
      %s223 = smul.addr %s222, 8
      %s224 = scalar_lea.vmem %s5, %s223
      %vm226 = vcmask 132096
      %227 = vst.msk [vmem:[#allocation2] sm:$0x3] %vm226, 0
      %vm228 = vcmask 271496
      %229 = vst.msk [vmem:[#allocation2 + $0x4] sm:$0x3] %vm228, 0
      %vm230 = vcmask 134144
      %231 = vst.msk [vmem:[#allocation3] sm:$0xf] %vm230, 0
      %vm232 = vcmask 273544
      %233 = vst.msk [vmem:[#allocation3 + $0x8] sm:$0xf] %vm232, 0
      %v234 = vlaneseq
      %v235 = vand.u32 %v234, 127
      %v236 = vadd.s32 %v235, 128
      %vm237 = vcmp.lt.s32.totalorder %v235, 0
      %v238 = vsub.s32 0, %v235
      %v239 = vsel %vm237, %v238, %v235
      %v240 = vshrl.u32 %v239, 4
      %v241 = vand.u32 %v239, 15
      %v242 = vsub.s32 0, %v241
      %v243 = vsel %vm237, %v242, %v241
      %vm244 = vcmp.lt.s32.totalorder %v236, 0
      %v245 = vsub.s32 0, %v236
      %v246 = vsel %vm244, %v245, %v236
      %v247 = vshrl.u32 %v246, 4
      %v248 = vand.u32 %v246, 15
      %v249 = vsub.s32 0, %v248
      %v250 = vsel %vm244, %v249, %v248
      %vm251 = vcmp.ne.s32.totalorder %v243, 0
      %vm252 = vcmp.ne.s32.totalorder %v250, 0
      %vm253 = vcmp.lt.s32.totalorder %v243, 0
      %vm254 = vcmp.lt.s32.totalorder %v250, 0
      %vm255 = vmand %vm253, %vm251
      %vm256 = vmand %vm254, %vm252
      %v257 = vadd.s32 %v243, 16
      %v258 = vadd.s32 %v250, 16
      %v259 = vsel %vm255, %v257, %v243
      %v260 = vsel %vm256, %v258, %v250
      %vm261 = vcmp.ne.s32.totalorder %v259, 0
      %vm262 = vcmp.ne.s32.totalorder %v260, 0
      %vm263 = vcmp.ne.s32.totalorder %v259, 15
      %vm264 = vcmp.ne.s32.totalorder %v260, 15
      %v265 = vld [vmem:[%s219] sm:$0xf]
      %267 = vrot.lane.b32.xlu0 %v265, 17
      %v268 = vpop.permute.xlu0 %267
      %v269 = vrot.slane %v268, 6
      %vm270 = vcmask 138240
      %v271 = vsel %vm270, %v269, %v268
      %vm273 = vcmask 1041544
      %vm274 = vcmask 1043458
      %vm275 = vmor %vm274, %vm273
      %vm276 = vcmask 136196
      %vm277 = vmor %vm276, %vm275
      %278 = vst.msk [vmem:[#allocation2] sm:$0x3f] %vm277, %v271
      %v279 = vld [vmem:[#allocation2] sm:$0xf]
      %v280 = vld [vmem:[%s1] sm:$0xf]
      %v281 = vld [vmem:[#allocation2] sm:$0x3f]
      %s282 = scalar_lea.vmem %s1, 12
      %v283 = vld [vmem:[%s282] sm:$0xf]
      %v285 = vcombine.high %v281, %v281
      %v287 = vunpack.c.l.s4 1983009808
      %v288 = vunpack.c.0.s8 %v287
      %v289 = vlaneseq
      %v290 = vshrl.u32 %v289, 7
      %v291 = vsub.s32 %v288, %v290
      %v292 = vrot.slane %v281, %v291
      %v294 = vunpack.c.l.s4 1983009808
      %v295 = vunpack.c.0.s8 %v294
      %v296 = vlaneseq
      %v297 = vshrl.u32 %v296, 7
      %v298 = vsub.s32 %v295, %v297
      %v299 = vrot.slane %v285, %v298
      %v300 = vcombine.high %v292, %v292
      %301 = vrot.lane.b32.xlu0 %v292, 112
      %v302 = vpop.permute.xlu0 %301
      %303 = vrot.lane.b32.xlu0 %v300, 112
      %v304 = vpop.permute.xlu0 %303
      %305 = vrot.lane.b32.xlu0 %v299, 112
      %v306 = vpop.permute.xlu0 %305
      %vm307 = vcmask 916480
      %v308 = vsel %vm307, %v302, %v304
      %v309 = vsel %vm307, %v304, %v306
      %vm310 = vcmask 31744
      %v312 = vsel %vm310, %v283, 0
      %vm314 = vcmask 1041408
      %v316 = vsel %vm314, %v308, 0
      %v319 = vsel %vm314, %v309, 0
      %321 = vmatprep.subr.bf16.mxu0 %v319
      %322 = vmatpush1.bf16.msra.mxu0 %v316
      %323 = vmatprep.subr.bf16.mxu0 0
      %324 = vmatpush1.bf16.msra.mxu0 0
      %325 = vmatprep.subr.bf16.mxu0 0
      %326 = vmatpush1.bf16.msra.mxu0 0
      %327 = vmatprep.subr.bf16.mxu0 0
      %328 = vmatpush1.bf16.msra.mxu0 0
      %329 = vmatprep.subr.bf16.mxu0 0
      %330 = vmatpush1.bf16.msra.mxu0 0
      %331 = vmatprep.subr.bf16.mxu0 0
      %332 = vmatpush1.bf16.msra.mxu0 0
      %333 = vmatprep.subr.bf16.mxu0 0
      %334 = vmatpush1.bf16.msra.mxu0 0
      %335 = vmatprep.subr.bf16.mxu0 0
      %336 = vmatpush1.bf16.msra.mxu0 0
      %337 = vmatprep.subr.bf16.mxu0 0
      %338 = vmatpush1.bf16.msra.mxu0 0
      %339 = vmatprep.subr.bf16.mxu0 0
      %340 = vmatpush1.bf16.msra.mxu0 0
      %341 = vmatprep.subr.bf16.mxu0 0
      %342 = vmatpush1.bf16.msra.mxu0 0
      %343 = vmatprep.subr.bf16.mxu0 0
      %344 = vmatpush1.bf16.msra.mxu0 0
      %345 = vmatprep.subr.bf16.mxu0 0
      %346 = vmatpush1.bf16.msra.mxu0 0
      %347 = vmatprep.subr.bf16.mxu0 0
      %348 = vmatpush1.bf16.msra.mxu0 0
      %349 = vmatprep.subr.bf16.mxu0 0
      %350 = vmatpush1.bf16.msra.mxu0 0
      %351 = vmatprep.subr.bf16.mxu0 0
      %352 = vmatpush1.bf16.msra.mxu0 0
      %353 = vmatprep.mubr.bf16.mxu0 0
      %354 = vmatmul.mubr.bf16.gmra.mrb[0].mxu0 %v312
      %v355 = vpop.f32.mrb[0].mxu0
      %v356 = vadd.f32 0.0, %v355
      %v357 = vpop.f32.mrb[0].mxu0
      %v358 = vadd.f32 0.0, %v357
      %v359 = vpop.f32.mrb[0].mxu0
      %v360 = vpop.f32.mrb[0].mxu0
      %361 = vdwg.mxu0
      %v364 = vunpack.c.l.s4 1983009808
      %v365 = vunpack.c.0.s8 %v364
      %v366 = vlaneseq
      %v367 = vshrl.u32 %v366, 7
      %v368 = vsub.s32 %v365, %v367
      %v369 = vrot.slane %v279, %v368
      %v370 = vcombine.high %v369, %v369
      %v372 = vsel %vm310, %v280, 0
      %v375 = vsel %vm314, %v369, 0
      %v378 = vsel %vm314, %v370, 0
      %380 = vmatprep.subr.bf16.mxu0 %v378
      %381 = vmatpush1.bf16.msra.mxu0 %v375
      %382 = vmatprep.subr.bf16.mxu0 0
      %383 = vmatpush1.bf16.msra.mxu0 0
      %384 = vmatprep.subr.bf16.mxu0 0
      %385 = vmatpush1.bf16.msra.mxu0 0
      %386 = vmatprep.subr.bf16.mxu0 0
      %387 = vmatpush1.bf16.msra.mxu0 0
      %388 = vmatprep.subr.bf16.mxu0 0
      %389 = vmatpush1.bf16.msra.mxu0 0
      %390 = vmatprep.subr.bf16.mxu0 0
      %391 = vmatpush1.bf16.msra.mxu0 0
      %392 = vmatprep.subr.bf16.mxu0 0
      %393 = vmatpush1.bf16.msra.mxu0 0
      %394 = vmatprep.subr.bf16.mxu0 0
      %395 = vmatpush1.bf16.msra.mxu0 0
      %396 = vmatprep.subr.bf16.mxu0 0
      %397 = vmatpush1.bf16.msra.mxu0 0
      %398 = vmatprep.subr.bf16.mxu0 0
      %399 = vmatpush1.bf16.msra.mxu0 0
      %400 = vmatprep.subr.bf16.mxu0 0
      %401 = vmatpush1.bf16.msra.mxu0 0
      %402 = vmatprep.subr.bf16.mxu0 0
      %403 = vmatpush1.bf16.msra.mxu0 0
      %404 = vmatprep.subr.bf16.mxu0 0
      %405 = vmatpush1.bf16.msra.mxu0 0
      %406 = vmatprep.subr.bf16.mxu0 0
      %407 = vmatpush1.bf16.msra.mxu0 0
      %408 = vmatprep.subr.bf16.mxu0 0
      %409 = vmatpush1.bf16.msra.mxu0 0
      %410 = vmatprep.subr.bf16.mxu0 0
      %411 = vmatpush1.bf16.msra.mxu0 0
      %412 = vmatprep.mubr.bf16.mxu0 0
      %413 = vmatmul.mubr.bf16.gmra.mrb[0].mxu0 %v372
      %v414 = vpop.f32.mrb[0].mxu0
      %v415 = vadd.f32 %v356, %v414
      %v416 = vpop.f32.mrb[0].mxu0
      %v417 = vadd.f32 %v358, %v416
      %v418 = vpop.f32.mrb[0].mxu0
      %v419 = vpop.f32.mrb[0].mxu0
      %420 = vdwg.mxu0
      %v421 = vld [vmem:[#allocation2] sm:$0x3f]
      %s422 = scalar_lea.vmem %s1, 24
      %v423 = vld [vmem:[%s422] sm:$0xf]
      %v425 = vcombine.high %v421, %v421
      %v427 = vunpack.c.l.s4 1983009808
      %v428 = vunpack.c.0.s8 %v427
      %v429 = vlaneseq
      %v430 = vshrl.u32 %v429, 7
      %v431 = vsub.s32 %v428, %v430
      %v432 = vrot.slane %v421, %v431
      %v434 = vunpack.c.l.s4 1983009808
      %v435 = vunpack.c.0.s8 %v434
      %v436 = vlaneseq
      %v437 = vshrl.u32 %v436, 7
      %v438 = vsub.s32 %v435, %v437
      %v439 = vrot.slane %v425, %v438
      %v440 = vcombine.high %v432, %v432
      %441 = vrot.lane.b32.xlu0 %v432, 96
      %v442 = vpop.permute.xlu0 %441
      %443 = vrot.lane.b32.xlu0 %v440, 96
      %v444 = vpop.permute.xlu0 %443
      %445 = vrot.lane.b32.xlu0 %v439, 96
      %v446 = vpop.permute.xlu0 %445
      %vm447 = vcmask 785408
      %v448 = vsel %vm447, %v442, %v444
      %v449 = vsel %vm447, %v444, %v446
      %v451 = vsel %vm310, %v423, 0
      %v454 = vsel %vm314, %v448, 0
      %v457 = vsel %vm314, %v449, 0
      %459 = vmatprep.subr.bf16.mxu0 %v457
      %460 = vmatpush1.bf16.msra.mxu0 %v454
      %461 = vmatprep.subr.bf16.mxu0 0
      %462 = vmatpush1.bf16.msra.mxu0 0
      %463 = vmatprep.subr.bf16.mxu0 0
      %464 = vmatpush1.bf16.msra.mxu0 0
      %465 = vmatprep.subr.bf16.mxu0 0
      %466 = vmatpush1.bf16.msra.mxu0 0
      %467 = vmatprep.subr.bf16.mxu0 0
      %468 = vmatpush1.bf16.msra.mxu0 0
      %469 = vmatprep.subr.bf16.mxu0 0
      %470 = vmatpush1.bf16.msra.mxu0 0
      %471 = vmatprep.subr.bf16.mxu0 0
      %472 = vmatpush1.bf16.msra.mxu0 0
      %473 = vmatprep.subr.bf16.mxu0 0
      %474 = vmatpush1.bf16.msra.mxu0 0
      %475 = vmatprep.subr.bf16.mxu0 0
      %476 = vmatpush1.bf16.msra.mxu0 0
      %477 = vmatprep.subr.bf16.mxu0 0
      %478 = vmatpush1.bf16.msra.mxu0 0
      %479 = vmatprep.subr.bf16.mxu0 0
      %480 = vmatpush1.bf16.msra.mxu0 0
      %481 = vmatprep.subr.bf16.mxu0 0
      %482 = vmatpush1.bf16.msra.mxu0 0
      %483 = vmatprep.subr.bf16.mxu0 0
      %484 = vmatpush1.bf16.msra.mxu0 0
      %485 = vmatprep.subr.bf16.mxu0 0
      %486 = vmatpush1.bf16.msra.mxu0 0
      %487 = vmatprep.subr.bf16.mxu0 0
      %488 = vmatpush1.bf16.msra.mxu0 0
      %489 = vmatprep.subr.bf16.mxu0 0
      %490 = vmatpush1.bf16.msra.mxu0 0
      %491 = vmatprep.mubr.bf16.mxu0 0
      %492 = vmatmul.mubr.bf16.gmra.mrb[0].mxu0 %v451
      %v493 = vpop.f32.mrb[0].mxu0
      %v494 = vadd.f32 0.0, %v493
      %v495 = vpop.f32.mrb[0].mxu0
      %v496 = vadd.f32 0.0, %v495
      %v497 = vpop.f32.mrb[0].mxu0
      %v498 = vpop.f32.mrb[0].mxu0
      %499 = vdwg.mxu0
      %v500 = vadd.f32 %v415, %v494
      %v501 = vadd.f32 %v417, %v496
      %v502 = vsel %vm261, 1, 0
      %v503 = vsel %vm262, 1, 0
      %vm504 = vcmp.eq.s32.totalorder %v502, 1
      %vm505 = vcmp.eq.s32.totalorder %v503, 1
      %v506 = vsel %vm504, %v500, 0.0
      %v507 = vsel %vm505, %v501, 0.0
      %v508 = vld [vmem:[#allocation2] sm:$0x3f]
      %s509 = scalar_lea.vmem %s1, 4
      %v510 = vld [vmem:[%s509] sm:$0xf]
      %s511 = scalar_lea.vmem %s1, 16
      %v512 = vld [vmem:[%s511] sm:$0xf]
      %v514 = vcombine.high %v508, %v508
      %v516 = vunpack.c.l.s4 1983009808
      %v517 = vunpack.c.0.s8 %v516
      %v518 = vlaneseq
      %v519 = vshrl.u32 %v518, 7
      %v520 = vsub.s32 %v517, %v519
      %v521 = vrot.slane %v508, %v520
      %v523 = vunpack.c.l.s4 1983009808
      %v524 = vunpack.c.0.s8 %v523
      %v525 = vlaneseq
      %v526 = vshrl.u32 %v525, 7
      %v527 = vsub.s32 %v524, %v526
      %v528 = vrot.slane %v514, %v527
      %v529 = vcombine.high %v521, %v521
      %530 = vrot.lane.b32.xlu0 %v521, 111
      %v531 = vpop.permute.xlu0 %530
      %532 = vrot.lane.b32.xlu0 %v529, 111
      %v533 = vpop.permute.xlu0 %532
      %534 = vrot.lane.b32.xlu0 %v528, 111
      %v535 = vpop.permute.xlu0 %534
      %vm536 = vcmask 908288
      %v537 = vsel %vm536, %v531, %v533
      %v538 = vsel %vm536, %v533, %v535
      %v540 = vsel %vm310, %v512, 0
      %v543 = vsel %vm314, %v537, 0
      %v546 = vsel %vm314, %v538, 0
      %548 = vmatprep.subr.bf16.mxu0 %v546
      %549 = vmatpush1.bf16.msra.mxu0 %v543
      %550 = vmatprep.subr.bf16.mxu0 0
      %551 = vmatpush1.bf16.msra.mxu0 0
      %552 = vmatprep.subr.bf16.mxu0 0
      %553 = vmatpush1.bf16.msra.mxu0 0
      %554 = vmatprep.subr.bf16.mxu0 0
      %555 = vmatpush1.bf16.msra.mxu0 0
      %556 = vmatprep.subr.bf16.mxu0 0
      %557 = vmatpush1.bf16.msra.mxu0 0
      %558 = vmatprep.subr.bf16.mxu0 0
      %559 = vmatpush1.bf16.msra.mxu0 0
      %560 = vmatprep.subr.bf16.mxu0 0
      %561 = vmatpush1.bf16.msra.mxu0 0
      %562 = vmatprep.subr.bf16.mxu0 0
      %563 = vmatpush1.bf16.msra.mxu0 0
      %564 = vmatprep.subr.bf16.mxu0 0
      %565 = vmatpush1.bf16.msra.mxu0 0
      %566 = vmatprep.subr.bf16.mxu0 0
      %567 = vmatpush1.bf16.msra.mxu0 0
      %568 = vmatprep.subr.bf16.mxu0 0
      %569 = vmatpush1.bf16.msra.mxu0 0
      %570 = vmatprep.subr.bf16.mxu0 0
      %571 = vmatpush1.bf16.msra.mxu0 0
      %572 = vmatprep.subr.bf16.mxu0 0
      %573 = vmatpush1.bf16.msra.mxu0 0
      %574 = vmatprep.subr.bf16.mxu0 0
      %575 = vmatpush1.bf16.msra.mxu0 0
      %576 = vmatprep.subr.bf16.mxu0 0
      %577 = vmatpush1.bf16.msra.mxu0 0
      %578 = vmatprep.subr.bf16.mxu0 0
      %579 = vmatpush1.bf16.msra.mxu0 0
      %580 = vmatprep.mubr.bf16.mxu0 0
      %581 = vmatmul.mubr.bf16.gmra.mrb[0].mxu0 %v540
      %v582 = vpop.f32.mrb[0].mxu0
      %v583 = vadd.f32 0.0, %v582
      %v584 = vpop.f32.mrb[0].mxu0
      %v585 = vadd.f32 0.0, %v584
      %v586 = vpop.f32.mrb[0].mxu0
      %v587 = vpop.f32.mrb[0].mxu0
      %588 = vdwg.mxu0
      %589 = vrot.lane.b32.xlu0 %v521, 127
      %v590 = vpop.permute.xlu0 %589
      %591 = vrot.lane.b32.xlu0 %v529, 127
      %v592 = vpop.permute.xlu0 %591
      %593 = vrot.lane.b32.xlu0 %v528, 127
      %v594 = vpop.permute.xlu0 %593
      %vm595 = vcmask 1039360
      %v596 = vsel %vm595, %v590, %v592
      %v597 = vsel %vm595, %v592, %v594
      %v599 = vsel %vm310, %v510, 0
      %v602 = vsel %vm314, %v596, 0
      %v605 = vsel %vm314, %v597, 0
      %607 = vmatprep.subr.bf16.mxu0 %v605
      %608 = vmatpush1.bf16.msra.mxu0 %v602
      %609 = vmatprep.subr.bf16.mxu0 0
      %610 = vmatpush1.bf16.msra.mxu0 0
      %611 = vmatprep.subr.bf16.mxu0 0
      %612 = vmatpush1.bf16.msra.mxu0 0
      %613 = vmatprep.subr.bf16.mxu0 0
      %614 = vmatpush1.bf16.msra.mxu0 0
      %615 = vmatprep.subr.bf16.mxu0 0
      %616 = vmatpush1.bf16.msra.mxu0 0
      %617 = vmatprep.subr.bf16.mxu0 0
      %618 = vmatpush1.bf16.msra.mxu0 0
      %619 = vmatprep.subr.bf16.mxu0 0
      %620 = vmatpush1.bf16.msra.mxu0 0
      %621 = vmatprep.subr.bf16.mxu0 0
      %622 = vmatpush1.bf16.msra.mxu0 0
      %623 = vmatprep.subr.bf16.mxu0 0
      %624 = vmatpush1.bf16.msra.mxu0 0
      %625 = vmatprep.subr.bf16.mxu0 0
      %626 = vmatpush1.bf16.msra.mxu0 0
      %627 = vmatprep.subr.bf16.mxu0 0
      %628 = vmatpush1.bf16.msra.mxu0 0
      %629 = vmatprep.subr.bf16.mxu0 0
      %630 = vmatpush1.bf16.msra.mxu0 0
      %631 = vmatprep.subr.bf16.mxu0 0
      %632 = vmatpush1.bf16.msra.mxu0 0
      %633 = vmatprep.subr.bf16.mxu0 0
      %634 = vmatpush1.bf16.msra.mxu0 0
      %635 = vmatprep.subr.bf16.mxu0 0
      %636 = vmatpush1.bf16.msra.mxu0 0
      %637 = vmatprep.subr.bf16.mxu0 0
      %638 = vmatpush1.bf16.msra.mxu0 0
      %639 = vmatprep.mubr.bf16.mxu0 0
      %640 = vmatmul.mubr.bf16.gmra.mrb[0].mxu0 %v599
      %v641 = vpop.f32.mrb[0].mxu0
      %v642 = vadd.f32 %v583, %v641
      %v643 = vpop.f32.mrb[0].mxu0
      %v644 = vadd.f32 %v585, %v643
      %v645 = vpop.f32.mrb[0].mxu0
      %v646 = vpop.f32.mrb[0].mxu0
      %647 = vdwg.mxu0
      %v648 = vld [vmem:[#allocation2] sm:$0x3f]
      %s649 = scalar_lea.vmem %s1, 28
      %v650 = vld [vmem:[%s649] sm:$0xf]
      %v652 = vcombine.high %v648, %v648
      %v654 = vunpack.c.l.s4 1983009808
      %v655 = vunpack.c.0.s8 %v654
      %v656 = vlaneseq
      %v657 = vshrl.u32 %v656, 7
      %v658 = vsub.s32 %v655, %v657
      %v659 = vrot.slane %v648, %v658
      %v661 = vunpack.c.l.s4 1983009808
      %v662 = vunpack.c.0.s8 %v661
      %v663 = vlaneseq
      %v664 = vshrl.u32 %v663, 7
      %v665 = vsub.s32 %v662, %v664
      %v666 = vrot.slane %v652, %v665
      %v667 = vcombine.high %v659, %v659
      %668 = vrot.lane.b32.xlu0 %v659, 95
      %v669 = vpop.permute.xlu0 %668
      %670 = vrot.lane.b32.xlu0 %v667, 95
      %v671 = vpop.permute.xlu0 %670
      %672 = vrot.lane.b32.xlu0 %v666, 95
      %v673 = vpop.permute.xlu0 %672
      %vm674 = vcmask 777216
      %v675 = vsel %vm674, %v669, %v671
      %v676 = vsel %vm674, %v671, %v673
      %v678 = vsel %vm310, %v650, 0
      %v681 = vsel %vm314, %v675, 0
      %v684 = vsel %vm314, %v676, 0
      %686 = vmatprep.subr.bf16.mxu0 %v684
      %687 = vmatpush1.bf16.msra.mxu0 %v681
      %688 = vmatprep.subr.bf16.mxu0 0
      %689 = vmatpush1.bf16.msra.mxu0 0
      %690 = vmatprep.subr.bf16.mxu0 0
      %691 = vmatpush1.bf16.msra.mxu0 0
      %692 = vmatprep.subr.bf16.mxu0 0
      %693 = vmatpush1.bf16.msra.mxu0 0
      %694 = vmatprep.subr.bf16.mxu0 0
      %695 = vmatpush1.bf16.msra.mxu0 0
      %696 = vmatprep.subr.bf16.mxu0 0
      %697 = vmatpush1.bf16.msra.mxu0 0
      %698 = vmatprep.subr.bf16.mxu0 0
      %699 = vmatpush1.bf16.msra.mxu0 0
      %700 = vmatprep.subr.bf16.mxu0 0
      %701 = vmatpush1.bf16.msra.mxu0 0
      %702 = vmatprep.subr.bf16.mxu0 0
      %703 = vmatpush1.bf16.msra.mxu0 0
      %704 = vmatprep.subr.bf16.mxu0 0
      %705 = vmatpush1.bf16.msra.mxu0 0
      %706 = vmatprep.subr.bf16.mxu0 0
      %707 = vmatpush1.bf16.msra.mxu0 0
      %708 = vmatprep.subr.bf16.mxu0 0
      %709 = vmatpush1.bf16.msra.mxu0 0
      %710 = vmatprep.subr.bf16.mxu0 0
      %711 = vmatpush1.bf16.msra.mxu0 0
      %712 = vmatprep.subr.bf16.mxu0 0
      %713 = vmatpush1.bf16.msra.mxu0 0
      %714 = vmatprep.subr.bf16.mxu0 0
      %715 = vmatpush1.bf16.msra.mxu0 0
      %716 = vmatprep.subr.bf16.mxu0 0
      %717 = vmatpush1.bf16.msra.mxu0 0
      %718 = vmatprep.mubr.bf16.mxu0 0
      %719 = vmatmul.mubr.bf16.gmra.mrb[0].mxu0 %v678
      %v720 = vpop.f32.mrb[0].mxu0
      %v721 = vadd.f32 0.0, %v720
      %v722 = vpop.f32.mrb[0].mxu0
      %v723 = vadd.f32 0.0, %v722
      %v724 = vpop.f32.mrb[0].mxu0
      %v725 = vpop.f32.mrb[0].mxu0
      %726 = vdwg.mxu0
      %v727 = vadd.f32 %v642, %v721
      %v728 = vadd.f32 %v644, %v723
      %v729 = vadd.f32 %v506, %v727
      %v730 = vadd.f32 %v507, %v728
      %v731 = vld [vmem:[#allocation2] sm:$0x3f]
      %s732 = scalar_lea.vmem %s1, 8
      %v733 = vld [vmem:[%s732] sm:$0xf]
      %s734 = scalar_lea.vmem %s1, 20
      %v735 = vld [vmem:[%s734] sm:$0xf]
      %v737 = vcombine.high %v731, %v731
      %v739 = vunpack.c.l.s4 1983009808
      %v740 = vunpack.c.0.s8 %v739
      %v741 = vlaneseq
      %v742 = vshrl.u32 %v741, 7
      %v743 = vsub.s32 %v740, %v742
      %v744 = vrot.slane %v731, %v743
      %v746 = vunpack.c.l.s4 1983009808
      %v747 = vunpack.c.0.s8 %v746
      %v748 = vlaneseq
      %v749 = vshrl.u32 %v748, 7
      %v750 = vsub.s32 %v747, %v749
      %v751 = vrot.slane %v737, %v750
      %v752 = vcombine.high %v744, %v744
      %753 = vrot.lane.b32.xlu0 %v744, 110
      %v754 = vpop.permute.xlu0 %753
      %755 = vrot.lane.b32.xlu0 %v752, 110
      %v756 = vpop.permute.xlu0 %755
      %757 = vrot.lane.b32.xlu0 %v751, 110
      %v758 = vpop.permute.xlu0 %757
      %vm759 = vcmask 900096
      %v760 = vsel %vm759, %v754, %v756
      %v761 = vsel %vm759, %v756, %v758
      %v763 = vsel %vm310, %v735, 0
      %v766 = vsel %vm314, %v760, 0
      %v769 = vsel %vm314, %v761, 0
      %771 = vmatprep.subr.bf16.mxu0 %v769
      %772 = vmatpush1.bf16.msra.mxu0 %v766
      %773 = vmatprep.subr.bf16.mxu0 0
      %774 = vmatpush1.bf16.msra.mxu0 0
      %775 = vmatprep.subr.bf16.mxu0 0
      %776 = vmatpush1.bf16.msra.mxu0 0
      %777 = vmatprep.subr.bf16.mxu0 0
      %778 = vmatpush1.bf16.msra.mxu0 0
      %779 = vmatprep.subr.bf16.mxu0 0
      %780 = vmatpush1.bf16.msra.mxu0 0
      %781 = vmatprep.subr.bf16.mxu0 0
      %782 = vmatpush1.bf16.msra.mxu0 0
      %783 = vmatprep.subr.bf16.mxu0 0
      %784 = vmatpush1.bf16.msra.mxu0 0
      %785 = vmatprep.subr.bf16.mxu0 0
      %786 = vmatpush1.bf16.msra.mxu0 0
      %787 = vmatprep.subr.bf16.mxu0 0
      %788 = vmatpush1.bf16.msra.mxu0 0
      %789 = vmatprep.subr.bf16.mxu0 0
      %790 = vmatpush1.bf16.msra.mxu0 0
      %791 = vmatprep.subr.bf16.mxu0 0
      %792 = vmatpush1.bf16.msra.mxu0 0
      %793 = vmatprep.subr.bf16.mxu0 0
      %794 = vmatpush1.bf16.msra.mxu0 0
      %795 = vmatprep.subr.bf16.mxu0 0
      %796 = vmatpush1.bf16.msra.mxu0 0
      %797 = vmatprep.subr.bf16.mxu0 0
      %798 = vmatpush1.bf16.msra.mxu0 0
      %799 = vmatprep.subr.bf16.mxu0 0
      %800 = vmatpush1.bf16.msra.mxu0 0
      %801 = vmatprep.subr.bf16.mxu0 0
      %802 = vmatpush1.bf16.msra.mxu0 0
      %803 = vmatprep.mubr.bf16.mxu0 0
      %804 = vmatmul.mubr.bf16.gmra.mrb[0].mxu0 %v763
      %v805 = vpop.f32.mrb[0].mxu0
      %v806 = vadd.f32 0.0, %v805
      %v807 = vpop.f32.mrb[0].mxu0
      %v808 = vadd.f32 0.0, %v807
      %v809 = vpop.f32.mrb[0].mxu0
      %v810 = vpop.f32.mrb[0].mxu0
      %811 = vdwg.mxu0
      %812 = vrot.lane.b32.xlu0 %v744, 126
      %v813 = vpop.permute.xlu0 %812
      %814 = vrot.lane.b32.xlu0 %v752, 126
      %v815 = vpop.permute.xlu0 %814
      %816 = vrot.lane.b32.xlu0 %v751, 126
      %v817 = vpop.permute.xlu0 %816
      %vm818 = vcmask 1031168
      %v819 = vsel %vm818, %v813, %v815
      %v820 = vsel %vm818, %v815, %v817
      %v822 = vsel %vm310, %v733, 0
      %v825 = vsel %vm314, %v819, 0
      %v828 = vsel %vm314, %v820, 0
      %830 = vmatprep.subr.bf16.mxu0 %v828
      %831 = vmatpush1.bf16.msra.mxu0 %v825
      %832 = vmatprep.subr.bf16.mxu0 0
      %833 = vmatpush1.bf16.msra.mxu0 0
      %834 = vmatprep.subr.bf16.mxu0 0
      %835 = vmatpush1.bf16.msra.mxu0 0
      %836 = vmatprep.subr.bf16.mxu0 0
      %837 = vmatpush1.bf16.msra.mxu0 0
      %838 = vmatprep.subr.bf16.mxu0 0
      %839 = vmatpush1.bf16.msra.mxu0 0
      %840 = vmatprep.subr.bf16.mxu0 0
      %841 = vmatpush1.bf16.msra.mxu0 0
      %842 = vmatprep.subr.bf16.mxu0 0
      %843 = vmatpush1.bf16.msra.mxu0 0
      %844 = vmatprep.subr.bf16.mxu0 0
      %845 = vmatpush1.bf16.msra.mxu0 0
      %846 = vmatprep.subr.bf16.mxu0 0
      %847 = vmatpush1.bf16.msra.mxu0 0
      %848 = vmatprep.subr.bf16.mxu0 0
      %849 = vmatpush1.bf16.msra.mxu0 0
      %850 = vmatprep.subr.bf16.mxu0 0
      %851 = vmatpush1.bf16.msra.mxu0 0
      %852 = vmatprep.subr.bf16.mxu0 0
      %853 = vmatpush1.bf16.msra.mxu0 0
      %854 = vmatprep.subr.bf16.mxu0 0
      %855 = vmatpush1.bf16.msra.mxu0 0
      %856 = vmatprep.subr.bf16.mxu0 0
      %857 = vmatpush1.bf16.msra.mxu0 0
      %858 = vmatprep.subr.bf16.mxu0 0
      %859 = vmatpush1.bf16.msra.mxu0 0
      %860 = vmatprep.subr.bf16.mxu0 0
      %861 = vmatpush1.bf16.msra.mxu0 0
      %862 = vmatprep.mubr.bf16.mxu0 0
      %863 = vmatmul.mubr.bf16.gmra.mrb[0].mxu0 %v822
      %v864 = vpop.f32.mrb[0].mxu0
      %v865 = vadd.f32 %v806, %v864
      %v866 = vpop.f32.mrb[0].mxu0
      %v867 = vadd.f32 %v808, %v866
      %v868 = vpop.f32.mrb[0].mxu0
      %v869 = vpop.f32.mrb[0].mxu0
      %870 = vdwg.mxu0
      %v871 = vld [vmem:[#allocation2] sm:$0x3f]
      %s872 = scalar_lea.vmem %s1, 32
      %v873 = vld [vmem:[%s872] sm:$0xf]
      %v875 = vcombine.high %v871, %v871
      %v877 = vunpack.c.l.s4 1983009808
      %v878 = vunpack.c.0.s8 %v877
      %v879 = vlaneseq
      %v880 = vshrl.u32 %v879, 7
      %v881 = vsub.s32 %v878, %v880
      %v882 = vrot.slane %v871, %v881
      %v884 = vunpack.c.l.s4 1983009808
      %v885 = vunpack.c.0.s8 %v884
      %v886 = vlaneseq
      %v887 = vshrl.u32 %v886, 7
      %v888 = vsub.s32 %v885, %v887
      %v889 = vrot.slane %v875, %v888
      %v890 = vcombine.high %v882, %v882
      %891 = vrot.lane.b32.xlu0 %v882, 94
      %v892 = vpop.permute.xlu0 %891
      %893 = vrot.lane.b32.xlu0 %v890, 94
      %v894 = vpop.permute.xlu0 %893
      %895 = vrot.lane.b32.xlu0 %v889, 94
      %v896 = vpop.permute.xlu0 %895
      %vm897 = vcmask 769024
      %v898 = vsel %vm897, %v892, %v894
      %v899 = vsel %vm897, %v894, %v896
      %v901 = vsel %vm310, %v873, 0
      %v904 = vsel %vm314, %v898, 0
      %v907 = vsel %vm314, %v899, 0
      %909 = vmatprep.subr.bf16.mxu0 %v907
      %910 = vmatpush1.bf16.msra.mxu0 %v904
      %911 = vmatprep.subr.bf16.mxu0 0
      %912 = vmatpush1.bf16.msra.mxu0 0
      %913 = vmatprep.subr.bf16.mxu0 0
      %914 = vmatpush1.bf16.msra.mxu0 0
      %915 = vmatprep.subr.bf16.mxu0 0
      %916 = vmatpush1.bf16.msra.mxu0 0
      %917 = vmatprep.subr.bf16.mxu0 0
      %918 = vmatpush1.bf16.msra.mxu0 0
      %919 = vmatprep.subr.bf16.mxu0 0
      %920 = vmatpush1.bf16.msra.mxu0 0
      %921 = vmatprep.subr.bf16.mxu0 0
      %922 = vmatpush1.bf16.msra.mxu0 0
      %923 = vmatprep.subr.bf16.mxu0 0
      %924 = vmatpush1.bf16.msra.mxu0 0
      %925 = vmatprep.subr.bf16.mxu0 0
      %926 = vmatpush1.bf16.msra.mxu0 0
      %927 = vmatprep.subr.bf16.mxu0 0
      %928 = vmatpush1.bf16.msra.mxu0 0
      %929 = vmatprep.subr.bf16.mxu0 0
      %930 = vmatpush1.bf16.msra.mxu0 0
      %931 = vmatprep.subr.bf16.mxu0 0
      %932 = vmatpush1.bf16.msra.mxu0 0
      %933 = vmatprep.subr.bf16.mxu0 0
      %934 = vmatpush1.bf16.msra.mxu0 0
      %935 = vmatprep.subr.bf16.mxu0 0
      %936 = vmatpush1.bf16.msra.mxu0 0
      %937 = vmatprep.subr.bf16.mxu0 0
      %938 = vmatpush1.bf16.msra.mxu0 0
      %939 = vmatprep.subr.bf16.mxu0 0
      %940 = vmatpush1.bf16.msra.mxu0 0
      %941 = vmatprep.mubr.bf16.mxu0 0
      %942 = vmatmul.mubr.bf16.gmra.mrb[0].mxu0 %v901
      %v943 = vpop.f32.mrb[0].mxu0
      %v944 = vadd.f32 0.0, %v943
      %v945 = vpop.f32.mrb[0].mxu0
      %v946 = vadd.f32 0.0, %v945
      %v947 = vpop.f32.mrb[0].mxu0
      %v948 = vpop.f32.mrb[0].mxu0
      %949 = vdwg.mxu0
      %v950 = vadd.f32 %v865, %v944
      %v951 = vadd.f32 %v867, %v946
      %v952 = vsel %vm263, 1, 0
      %v953 = vsel %vm264, 1, 0
      %vm954 = vcmp.eq.s32.totalorder %v952, 1
      %vm955 = vcmp.eq.s32.totalorder %v953, 1
      %v956 = vsel %vm954, %v950, 0.0
      %v957 = vsel %vm955, %v951, 0.0
      %v958 = vadd.f32 %v729, %v956
      %v959 = vadd.f32 %v730, %v957
      %v960 = vld [vmem:[%s2] sm:$0xff]
      %962 = vset.pattern.permute.xlu0 0
      %963 = vperm.xlu0 %962, %v960
      %v964 = vpop.permute.xlu0 %963
      %v966 = vadd.f32 %v958, %v964
      %v967 = vadd.f32 %v959, %v964
      %v968 = vmax.f32 %v966, 0.0
      %v969 = vmax.f32 %v967, 0.0
      %v970 = vpack.c.bf16 %v968, %v968
      %v971 = vpack.c.bf16 %v969, %v969
      %v974 = vunpack.c.l.b16 %v970
      %v975 = vunpack.c.l.b16 %v971
      %v976 = vpack.c.b16 %v975, %v974
      %977 = vrot.lane.b32.xlu0 %v976, 17
      %v978 = vpop.permute.xlu0 %977
      %v979 = vrot.slane %v978, 4
      %v980 = vsel %vm270, %v979, %v978
      %vm983 = vcmask 1043592
      %vm984 = vcmask 1047556
      %vm985 = vmor %vm984, %vm983
      %986 = vst.msk [vmem:[#allocation3] sm:$0xff] %vm985, %v980
      %987 = vst.msk [vmem:[#allocation3 + $0x8] sm:$0xf] %vm230, %v979
      %v988 = vld [vmem:[#allocation3] sm:$0xff]
      %v989 = vld [vmem:[%s3] sm:$0xf]
      %v990 = vld [vmem:[#allocation3 + $0x8] sm:$0xf]
      %s991 = scalar_lea.vmem %s3, 12
      %v992 = vld [vmem:[%s991] sm:$0xf]
      %v995 = vunpack.c.l.b16 %v988
      %v996 = vunpack.c.h.b16 %v988
      %v997 = vunpack.c.l.b16 %v990
      %v998 = vpack.c.b16 %v995, %v995
      %v999 = vpack.c.b16 %v996, %v996
      %v1000 = vpack.c.b16 %v997, %v997
      %1001 = vrot.lane.b32.xlu0 %v998, 112
      %v1002 = vpop.permute.xlu0 %1001
      %1003 = vrot.lane.b32.xlu0 %v999, 112
      %v1004 = vpop.permute.xlu0 %1003
      %1005 = vrot.lane.b32.xlu0 %v1000, 112
      %v1006 = vpop.permute.xlu0 %1005
      %v1007 = vsel %vm307, %v1002, %v1004
      %v1008 = vsel %vm307, %v1004, %v1006
      %vm1009 = vcmask 64512
      %v1011 = vsel %vm1009, %v992, 0
      %vm1013 = vcmask 1043456
      %v1015 = vsel %vm1013, %v1007, 0
      %v1018 = vsel %vm1013, %v1008, 0
      %1020 = vmatprep.subr.bf16.mxu0 %v1018
      %1021 = vmatpush1.bf16.msra.mxu0 %v1015
      %1022 = vmatprep.subr.bf16.mxu0 0
      %1023 = vmatpush1.bf16.msra.mxu0 0
      %1024 = vmatprep.subr.bf16.mxu0 0
      %1025 = vmatpush1.bf16.msra.mxu0 0
      %1026 = vmatprep.subr.bf16.mxu0 0
      %1027 = vmatpush1.bf16.msra.mxu0 0
      %1028 = vmatprep.subr.bf16.mxu0 0
      %1029 = vmatpush1.bf16.msra.mxu0 0
      %1030 = vmatprep.subr.bf16.mxu0 0
      %1031 = vmatpush1.bf16.msra.mxu0 0
      %1032 = vmatprep.subr.bf16.mxu0 0
      %1033 = vmatpush1.bf16.msra.mxu0 0
      %1034 = vmatprep.subr.bf16.mxu0 0
      %1035 = vmatpush1.bf16.msra.mxu0 0
      %1036 = vmatprep.subr.bf16.mxu0 0
      %1037 = vmatpush1.bf16.msra.mxu0 0
      %1038 = vmatprep.subr.bf16.mxu0 0
      %1039 = vmatpush1.bf16.msra.mxu0 0
      %1040 = vmatprep.subr.bf16.mxu0 0
      %1041 = vmatpush1.bf16.msra.mxu0 0
      %1042 = vmatprep.subr.bf16.mxu0 0
      %1043 = vmatpush1.bf16.msra.mxu0 0
      %1044 = vmatprep.subr.bf16.mxu0 0
      %1045 = vmatpush1.bf16.msra.mxu0 0
      %1046 = vmatprep.subr.bf16.mxu0 0
      %1047 = vmatpush1.bf16.msra.mxu0 0
      %1048 = vmatprep.subr.bf16.mxu0 0
      %1049 = vmatpush1.bf16.msra.mxu0 0
      %1050 = vmatprep.subr.bf16.mxu0 0
      %1051 = vmatpush1.bf16.msra.mxu0 0
      %1052 = vmatprep.mubr.bf16.mxu0 0
      %1053 = vmatmul.mubr.bf16.gmra.mrb[0].mxu0 %v1011
      %v1054 = vpop.f32.mrb[0].mxu0
      %v1055 = vadd.f32 0.0, %v1054
      %v1056 = vpop.f32.mrb[0].mxu0
      %v1057 = vadd.f32 0.0, %v1056
      %v1058 = vpop.f32.mrb[0].mxu0
      %v1059 = vpop.f32.mrb[0].mxu0
      %1060 = vdwg.mxu0
      %v1062 = vsel %vm1009, %v989, 0
      %v1065 = vsel %vm1013, %v998, 0
      %v1068 = vsel %vm1013, %v999, 0
      %1070 = vmatprep.subr.bf16.mxu0 %v1068
      %1071 = vmatpush1.bf16.msra.mxu0 %v1065
      %1072 = vmatprep.subr.bf16.mxu0 0
      %1073 = vmatpush1.bf16.msra.mxu0 0
      %1074 = vmatprep.subr.bf16.mxu0 0
      %1075 = vmatpush1.bf16.msra.mxu0 0
      %1076 = vmatprep.subr.bf16.mxu0 0
      %1077 = vmatpush1.bf16.msra.mxu0 0
      %1078 = vmatprep.subr.bf16.mxu0 0
      %1079 = vmatpush1.bf16.msra.mxu0 0
      %1080 = vmatprep.subr.bf16.mxu0 0
      %1081 = vmatpush1.bf16.msra.mxu0 0
      %1082 = vmatprep.subr.bf16.mxu0 0
      %1083 = vmatpush1.bf16.msra.mxu0 0
      %1084 = vmatprep.subr.bf16.mxu0 0
      %1085 = vmatpush1.bf16.msra.mxu0 0
      %1086 = vmatprep.subr.bf16.mxu0 0
      %1087 = vmatpush1.bf16.msra.mxu0 0
      %1088 = vmatprep.subr.bf16.mxu0 0
      %1089 = vmatpush1.bf16.msra.mxu0 0
      %1090 = vmatprep.subr.bf16.mxu0 0
      %1091 = vmatpush1.bf16.msra.mxu0 0
      %1092 = vmatprep.subr.bf16.mxu0 0
      %1093 = vmatpush1.bf16.msra.mxu0 0
      %1094 = vmatprep.subr.bf16.mxu0 0
      %1095 = vmatpush1.bf16.msra.mxu0 0
      %1096 = vmatprep.subr.bf16.mxu0 0
      %1097 = vmatpush1.bf16.msra.mxu0 0
      %1098 = vmatprep.subr.bf16.mxu0 0
      %1099 = vmatpush1.bf16.msra.mxu0 0
      %1100 = vmatprep.subr.bf16.mxu0 0
      %1101 = vmatpush1.bf16.msra.mxu0 0
      %1102 = vmatprep.mubr.bf16.mxu0 0
      %1103 = vmatmul.mubr.bf16.gmra.mrb[0].mxu0 %v1062
      %v1104 = vpop.f32.mrb[0].mxu0
      %v1105 = vadd.f32 %v1055, %v1104
      %v1106 = vpop.f32.mrb[0].mxu0
      %v1107 = vadd.f32 %v1057, %v1106
      %v1108 = vpop.f32.mrb[0].mxu0
      %v1109 = vpop.f32.mrb[0].mxu0
      %1110 = vdwg.mxu0
      %s1111 = scalar_lea.vmem %s3, 24
      %v1112 = vld [vmem:[%s1111] sm:$0xf]
      %1113 = vrot.lane.b32.xlu0 %v998, 96
      %v1114 = vpop.permute.xlu0 %1113
      %1115 = vrot.lane.b32.xlu0 %v999, 96
      %v1116 = vpop.permute.xlu0 %1115
      %1117 = vrot.lane.b32.xlu0 %v1000, 96
      %v1118 = vpop.permute.xlu0 %1117
      %v1119 = vsel %vm447, %v1114, %v1116
      %v1120 = vsel %vm447, %v1116, %v1118
      %v1122 = vsel %vm1009, %v1112, 0
      %v1125 = vsel %vm1013, %v1119, 0
      %v1128 = vsel %vm1013, %v1120, 0
      %1130 = vmatprep.subr.bf16.mxu0 %v1128
      %1131 = vmatpush1.bf16.msra.mxu0 %v1125
      %1132 = vmatprep.subr.bf16.mxu0 0
      %1133 = vmatpush1.bf16.msra.mxu0 0
      %1134 = vmatprep.subr.bf16.mxu0 0
      %1135 = vmatpush1.bf16.msra.mxu0 0
      %1136 = vmatprep.subr.bf16.mxu0 0
      %1137 = vmatpush1.bf16.msra.mxu0 0
      %1138 = vmatprep.subr.bf16.mxu0 0
      %1139 = vmatpush1.bf16.msra.mxu0 0
      %1140 = vmatprep.subr.bf16.mxu0 0
      %1141 = vmatpush1.bf16.msra.mxu0 0
      %1142 = vmatprep.subr.bf16.mxu0 0
      %1143 = vmatpush1.bf16.msra.mxu0 0
      %1144 = vmatprep.subr.bf16.mxu0 0
      %1145 = vmatpush1.bf16.msra.mxu0 0
      %1146 = vmatprep.subr.bf16.mxu0 0
      %1147 = vmatpush1.bf16.msra.mxu0 0
      %1148 = vmatprep.subr.bf16.mxu0 0
      %1149 = vmatpush1.bf16.msra.mxu0 0
      %1150 = vmatprep.subr.bf16.mxu0 0
      %1151 = vmatpush1.bf16.msra.mxu0 0
      %1152 = vmatprep.subr.bf16.mxu0 0
      %1153 = vmatpush1.bf16.msra.mxu0 0
      %1154 = vmatprep.subr.bf16.mxu0 0
      %1155 = vmatpush1.bf16.msra.mxu0 0
      %1156 = vmatprep.subr.bf16.mxu0 0
      %1157 = vmatpush1.bf16.msra.mxu0 0
      %1158 = vmatprep.subr.bf16.mxu0 0
      %1159 = vmatpush1.bf16.msra.mxu0 0
      %1160 = vmatprep.subr.bf16.mxu0 0
      %1161 = vmatpush1.bf16.msra.mxu0 0
      %1162 = vmatprep.mubr.bf16.mxu0 0
      %1163 = vmatmul.mubr.bf16.gmra.mrb[0].mxu0 %v1122
      %v1164 = vpop.f32.mrb[0].mxu0
      %v1165 = vadd.f32 0.0, %v1164
      %v1166 = vpop.f32.mrb[0].mxu0
      %v1167 = vadd.f32 0.0, %v1166
      %v1168 = vpop.f32.mrb[0].mxu0
      %v1169 = vpop.f32.mrb[0].mxu0
      %1170 = vdwg.mxu0
      %v1171 = vadd.f32 %v1105, %v1165
      %v1172 = vadd.f32 %v1107, %v1167
      %v1173 = vsel %vm504, %v1171, 0.0
      %v1174 = vsel %vm505, %v1172, 0.0
      %s1175 = scalar_lea.vmem %s3, 4
      %v1176 = vld [vmem:[%s1175] sm:$0xf]
      %s1177 = scalar_lea.vmem %s3, 16
      %v1178 = vld [vmem:[%s1177] sm:$0xf]
      %1179 = vrot.lane.b32.xlu0 %v998, 111
      %v1180 = vpop.permute.xlu0 %1179
      %1181 = vrot.lane.b32.xlu0 %v999, 111
      %v1182 = vpop.permute.xlu0 %1181
      %1183 = vrot.lane.b32.xlu0 %v1000, 111
      %v1184 = vpop.permute.xlu0 %1183
      %v1185 = vsel %vm536, %v1180, %v1182
      %v1186 = vsel %vm536, %v1182, %v1184
      %v1188 = vsel %vm1009, %v1178, 0
      %v1191 = vsel %vm1013, %v1185, 0
      %v1194 = vsel %vm1013, %v1186, 0
      %1196 = vmatprep.subr.bf16.mxu0 %v1194
      %1197 = vmatpush1.bf16.msra.mxu0 %v1191
      %1198 = vmatprep.subr.bf16.mxu0 0
      %1199 = vmatpush1.bf16.msra.mxu0 0
      %1200 = vmatprep.subr.bf16.mxu0 0
      %1201 = vmatpush1.bf16.msra.mxu0 0
      %1202 = vmatprep.subr.bf16.mxu0 0
      %1203 = vmatpush1.bf16.msra.mxu0 0
      %1204 = vmatprep.subr.bf16.mxu0 0
      %1205 = vmatpush1.bf16.msra.mxu0 0
      %1206 = vmatprep.subr.bf16.mxu0 0
      %1207 = vmatpush1.bf16.msra.mxu0 0
      %1208 = vmatprep.subr.bf16.mxu0 0
      %1209 = vmatpush1.bf16.msra.mxu0 0
      %1210 = vmatprep.subr.bf16.mxu0 0
      %1211 = vmatpush1.bf16.msra.mxu0 0
      %1212 = vmatprep.subr.bf16.mxu0 0
      %1213 = vmatpush1.bf16.msra.mxu0 0
      %1214 = vmatprep.subr.bf16.mxu0 0
      %1215 = vmatpush1.bf16.msra.mxu0 0
      %1216 = vmatprep.subr.bf16.mxu0 0
      %1217 = vmatpush1.bf16.msra.mxu0 0
      %1218 = vmatprep.subr.bf16.mxu0 0
      %1219 = vmatpush1.bf16.msra.mxu0 0
      %1220 = vmatprep.subr.bf16.mxu0 0
      %1221 = vmatpush1.bf16.msra.mxu0 0
      %1222 = vmatprep.subr.bf16.mxu0 0
      %1223 = vmatpush1.bf16.msra.mxu0 0
      %1224 = vmatprep.subr.bf16.mxu0 0
      %1225 = vmatpush1.bf16.msra.mxu0 0
      %1226 = vmatprep.subr.bf16.mxu0 0
      %1227 = vmatpush1.bf16.msra.mxu0 0
      %1228 = vmatprep.mubr.bf16.mxu0 0
      %1229 = vmatmul.mubr.bf16.gmra.mrb[0].mxu0 %v1188
      %v1230 = vpop.f32.mrb[0].mxu0
      %v1231 = vadd.f32 0.0, %v1230
      %v1232 = vpop.f32.mrb[0].mxu0
      %v1233 = vadd.f32 0.0, %v1232
      %v1234 = vpop.f32.mrb[0].mxu0
      %v1235 = vpop.f32.mrb[0].mxu0
      %1236 = vdwg.mxu0
      %1237 = vrot.lane.b32.xlu0 %v998, 127
      %v1238 = vpop.permute.xlu0 %1237
      %1239 = vrot.lane.b32.xlu0 %v999, 127
      %v1240 = vpop.permute.xlu0 %1239
      %1241 = vrot.lane.b32.xlu0 %v1000, 127
      %v1242 = vpop.permute.xlu0 %1241
      %v1243 = vsel %vm595, %v1238, %v1240
      %v1244 = vsel %vm595, %v1240, %v1242
      %v1246 = vsel %vm1009, %v1176, 0
      %v1249 = vsel %vm1013, %v1243, 0
      %v1252 = vsel %vm1013, %v1244, 0
      %1254 = vmatprep.subr.bf16.mxu0 %v1252
      %1255 = vmatpush1.bf16.msra.mxu0 %v1249
      %1256 = vmatprep.subr.bf16.mxu0 0
      %1257 = vmatpush1.bf16.msra.mxu0 0
      %1258 = vmatprep.subr.bf16.mxu0 0
      %1259 = vmatpush1.bf16.msra.mxu0 0
      %1260 = vmatprep.subr.bf16.mxu0 0
      %1261 = vmatpush1.bf16.msra.mxu0 0
      %1262 = vmatprep.subr.bf16.mxu0 0
      %1263 = vmatpush1.bf16.msra.mxu0 0
      %1264 = vmatprep.subr.bf16.mxu0 0
      %1265 = vmatpush1.bf16.msra.mxu0 0
      %1266 = vmatprep.subr.bf16.mxu0 0
      %1267 = vmatpush1.bf16.msra.mxu0 0
      %1268 = vmatprep.subr.bf16.mxu0 0
      %1269 = vmatpush1.bf16.msra.mxu0 0
      %1270 = vmatprep.subr.bf16.mxu0 0
      %1271 = vmatpush1.bf16.msra.mxu0 0
      %1272 = vmatprep.subr.bf16.mxu0 0
      %1273 = vmatpush1.bf16.msra.mxu0 0
      %1274 = vmatprep.subr.bf16.mxu0 0
      %1275 = vmatpush1.bf16.msra.mxu0 0
      %1276 = vmatprep.subr.bf16.mxu0 0
      %1277 = vmatpush1.bf16.msra.mxu0 0
      %1278 = vmatprep.subr.bf16.mxu0 0
      %1279 = vmatpush1.bf16.msra.mxu0 0
      %1280 = vmatprep.subr.bf16.mxu0 0
      %1281 = vmatpush1.bf16.msra.mxu0 0
      %1282 = vmatprep.subr.bf16.mxu0 0
      %1283 = vmatpush1.bf16.msra.mxu0 0
      %1284 = vmatprep.subr.bf16.mxu0 0
      %1285 = vmatpush1.bf16.msra.mxu0 0
      %1286 = vmatprep.mubr.bf16.mxu0 0
      %1287 = vmatmul.mubr.bf16.gmra.mrb[0].mxu0 %v1246
      %v1288 = vpop.f32.mrb[0].mxu0
      %v1289 = vadd.f32 %v1231, %v1288
      %v1290 = vpop.f32.mrb[0].mxu0
      %v1291 = vadd.f32 %v1233, %v1290
      %v1292 = vpop.f32.mrb[0].mxu0
      %v1293 = vpop.f32.mrb[0].mxu0
      %1294 = vdwg.mxu0
      %s1295 = scalar_lea.vmem %s3, 28
      %v1296 = vld [vmem:[%s1295] sm:$0xf]
      %1297 = vrot.lane.b32.xlu0 %v998, 95
      %v1298 = vpop.permute.xlu0 %1297
      %1299 = vrot.lane.b32.xlu0 %v999, 95
      %v1300 = vpop.permute.xlu0 %1299
      %1301 = vrot.lane.b32.xlu0 %v1000, 95
      %v1302 = vpop.permute.xlu0 %1301
      %v1303 = vsel %vm674, %v1298, %v1300
      %v1304 = vsel %vm674, %v1300, %v1302
      %v1306 = vsel %vm1009, %v1296, 0
      %v1309 = vsel %vm1013, %v1303, 0
      %v1312 = vsel %vm1013, %v1304, 0
      %1314 = vmatprep.subr.bf16.mxu0 %v1312
      %1315 = vmatpush1.bf16.msra.mxu0 %v1309
      %1316 = vmatprep.subr.bf16.mxu0 0
      %1317 = vmatpush1.bf16.msra.mxu0 0
      %1318 = vmatprep.subr.bf16.mxu0 0
      %1319 = vmatpush1.bf16.msra.mxu0 0
      %1320 = vmatprep.subr.bf16.mxu0 0
      %1321 = vmatpush1.bf16.msra.mxu0 0
      %1322 = vmatprep.subr.bf16.mxu0 0
      %1323 = vmatpush1.bf16.msra.mxu0 0
      %1324 = vmatprep.subr.bf16.mxu0 0
      %1325 = vmatpush1.bf16.msra.mxu0 0
      %1326 = vmatprep.subr.bf16.mxu0 0
      %1327 = vmatpush1.bf16.msra.mxu0 0
      %1328 = vmatprep.subr.bf16.mxu0 0
      %1329 = vmatpush1.bf16.msra.mxu0 0
      %1330 = vmatprep.subr.bf16.mxu0 0
      %1331 = vmatpush1.bf16.msra.mxu0 0
      %1332 = vmatprep.subr.bf16.mxu0 0
      %1333 = vmatpush1.bf16.msra.mxu0 0
      %1334 = vmatprep.subr.bf16.mxu0 0
      %1335 = vmatpush1.bf16.msra.mxu0 0
      %1336 = vmatprep.subr.bf16.mxu0 0
      %1337 = vmatpush1.bf16.msra.mxu0 0
      %1338 = vmatprep.subr.bf16.mxu0 0
      %1339 = vmatpush1.bf16.msra.mxu0 0
      %1340 = vmatprep.subr.bf16.mxu0 0
      %1341 = vmatpush1.bf16.msra.mxu0 0
      %1342 = vmatprep.subr.bf16.mxu0 0
      %1343 = vmatpush1.bf16.msra.mxu0 0
      %1344 = vmatprep.subr.bf16.mxu0 0
      %1345 = vmatpush1.bf16.msra.mxu0 0
      %1346 = vmatprep.mubr.bf16.mxu0 0
      %1347 = vmatmul.mubr.bf16.gmra.mrb[0].mxu0 %v1306
      %v1348 = vpop.f32.mrb[0].mxu0
      %v1349 = vadd.f32 0.0, %v1348
      %v1350 = vpop.f32.mrb[0].mxu0
      %v1351 = vadd.f32 0.0, %v1350
      %v1352 = vpop.f32.mrb[0].mxu0
      %v1353 = vpop.f32.mrb[0].mxu0
      %1354 = vdwg.mxu0
      %v1355 = vadd.f32 %v1289, %v1349
      %v1356 = vadd.f32 %v1291, %v1351
      %v1357 = vadd.f32 %v1173, %v1355
      %v1358 = vadd.f32 %v1174, %v1356
      %s1359 = scalar_lea.vmem %s3, 8
      %v1360 = vld [vmem:[%s1359] sm:$0xf]
      %s1361 = scalar_lea.vmem %s3, 20
      %v1362 = vld [vmem:[%s1361] sm:$0xf]
      %1363 = vrot.lane.b32.xlu0 %v998, 110
      %v1364 = vpop.permute.xlu0 %1363
      %1365 = vrot.lane.b32.xlu0 %v999, 110
      %v1366 = vpop.permute.xlu0 %1365
      %1367 = vrot.lane.b32.xlu0 %v1000, 110
      %v1368 = vpop.permute.xlu0 %1367
      %v1369 = vsel %vm759, %v1364, %v1366
      %v1370 = vsel %vm759, %v1366, %v1368
      %v1372 = vsel %vm1009, %v1362, 0
      %v1375 = vsel %vm1013, %v1369, 0
      %v1378 = vsel %vm1013, %v1370, 0
      %1380 = vmatprep.subr.bf16.mxu0 %v1378
      %1381 = vmatpush1.bf16.msra.mxu0 %v1375
      %1382 = vmatprep.subr.bf16.mxu0 0
      %1383 = vmatpush1.bf16.msra.mxu0 0
      %1384 = vmatprep.subr.bf16.mxu0 0
      %1385 = vmatpush1.bf16.msra.mxu0 0
      %1386 = vmatprep.subr.bf16.mxu0 0
      %1387 = vmatpush1.bf16.msra.mxu0 0
      %1388 = vmatprep.subr.bf16.mxu0 0
      %1389 = vmatpush1.bf16.msra.mxu0 0
      %1390 = vmatprep.subr.bf16.mxu0 0
      %1391 = vmatpush1.bf16.msra.mxu0 0
      %1392 = vmatprep.subr.bf16.mxu0 0
      %1393 = vmatpush1.bf16.msra.mxu0 0
      %1394 = vmatprep.subr.bf16.mxu0 0
      %1395 = vmatpush1.bf16.msra.mxu0 0
      %1396 = vmatprep.subr.bf16.mxu0 0
      %1397 = vmatpush1.bf16.msra.mxu0 0
      %1398 = vmatprep.subr.bf16.mxu0 0
      %1399 = vmatpush1.bf16.msra.mxu0 0
      %1400 = vmatprep.subr.bf16.mxu0 0
      %1401 = vmatpush1.bf16.msra.mxu0 0
      %1402 = vmatprep.subr.bf16.mxu0 0
      %1403 = vmatpush1.bf16.msra.mxu0 0
      %1404 = vmatprep.subr.bf16.mxu0 0
      %1405 = vmatpush1.bf16.msra.mxu0 0
      %1406 = vmatprep.subr.bf16.mxu0 0
      %1407 = vmatpush1.bf16.msra.mxu0 0
      %1408 = vmatprep.subr.bf16.mxu0 0
      %1409 = vmatpush1.bf16.msra.mxu0 0
      %1410 = vmatprep.subr.bf16.mxu0 0
      %1411 = vmatpush1.bf16.msra.mxu0 0
      %1412 = vmatprep.mubr.bf16.mxu0 0
      %1413 = vmatmul.mubr.bf16.gmra.mrb[0].mxu0 %v1372
      %v1414 = vpop.f32.mrb[0].mxu0
      %v1415 = vadd.f32 0.0, %v1414
      %v1416 = vpop.f32.mrb[0].mxu0
      %v1417 = vadd.f32 0.0, %v1416
      %v1418 = vpop.f32.mrb[0].mxu0
      %v1419 = vpop.f32.mrb[0].mxu0
      %1420 = vdwg.mxu0
      %1421 = vrot.lane.b32.xlu0 %v998, 126
      %v1422 = vpop.permute.xlu0 %1421
      %1423 = vrot.lane.b32.xlu0 %v999, 126
      %v1424 = vpop.permute.xlu0 %1423
      %1425 = vrot.lane.b32.xlu0 %v1000, 126
      %v1426 = vpop.permute.xlu0 %1425
      %v1427 = vsel %vm818, %v1422, %v1424
      %v1428 = vsel %vm818, %v1424, %v1426
      %v1430 = vsel %vm1009, %v1360, 0
      %v1433 = vsel %vm1013, %v1427, 0
      %v1436 = vsel %vm1013, %v1428, 0
      %1438 = vmatprep.subr.bf16.mxu0 %v1436
      %1439 = vmatpush1.bf16.msra.mxu0 %v1433
      %1440 = vmatprep.subr.bf16.mxu0 0
      %1441 = vmatpush1.bf16.msra.mxu0 0
      %1442 = vmatprep.subr.bf16.mxu0 0
      %1443 = vmatpush1.bf16.msra.mxu0 0
      %1444 = vmatprep.subr.bf16.mxu0 0
      %1445 = vmatpush1.bf16.msra.mxu0 0
      %1446 = vmatprep.subr.bf16.mxu0 0
      %1447 = vmatpush1.bf16.msra.mxu0 0
      %1448 = vmatprep.subr.bf16.mxu0 0
      %1449 = vmatpush1.bf16.msra.mxu0 0
      %1450 = vmatprep.subr.bf16.mxu0 0
      %1451 = vmatpush1.bf16.msra.mxu0 0
      %1452 = vmatprep.subr.bf16.mxu0 0
      %1453 = vmatpush1.bf16.msra.mxu0 0
      %1454 = vmatprep.subr.bf16.mxu0 0
      %1455 = vmatpush1.bf16.msra.mxu0 0
      %1456 = vmatprep.subr.bf16.mxu0 0
      %1457 = vmatpush1.bf16.msra.mxu0 0
      %1458 = vmatprep.subr.bf16.mxu0 0
      %1459 = vmatpush1.bf16.msra.mxu0 0
      %1460 = vmatprep.subr.bf16.mxu0 0
      %1461 = vmatpush1.bf16.msra.mxu0 0
      %1462 = vmatprep.subr.bf16.mxu0 0
      %1463 = vmatpush1.bf16.msra.mxu0 0
      %1464 = vmatprep.subr.bf16.mxu0 0
      %1465 = vmatpush1.bf16.msra.mxu0 0
      %1466 = vmatprep.subr.bf16.mxu0 0
      %1467 = vmatpush1.bf16.msra.mxu0 0
      %1468 = vmatprep.subr.bf16.mxu0 0
      %1469 = vmatpush1.bf16.msra.mxu0 0
      %1470 = vmatprep.mubr.bf16.mxu0 0
      %1471 = vmatmul.mubr.bf16.gmra.mrb[0].mxu0 %v1430
      %v1472 = vpop.f32.mrb[0].mxu0
      %v1473 = vadd.f32 %v1415, %v1472
      %v1474 = vpop.f32.mrb[0].mxu0
      %v1475 = vadd.f32 %v1417, %v1474
      %v1476 = vpop.f32.mrb[0].mxu0
      %v1477 = vpop.f32.mrb[0].mxu0
      %1478 = vdwg.mxu0
      %s1479 = scalar_lea.vmem %s3, 32
      %v1480 = vld [vmem:[%s1479] sm:$0xf]
      %1481 = vrot.lane.b32.xlu0 %v998, 94
      %v1482 = vpop.permute.xlu0 %1481
      %1483 = vrot.lane.b32.xlu0 %v999, 94
      %v1484 = vpop.permute.xlu0 %1483
      %1485 = vrot.lane.b32.xlu0 %v1000, 94
      %v1486 = vpop.permute.xlu0 %1485
      %v1487 = vsel %vm897, %v1482, %v1484
      %v1488 = vsel %vm897, %v1484, %v1486
      %v1490 = vsel %vm1009, %v1480, 0
      %v1493 = vsel %vm1013, %v1487, 0
      %v1496 = vsel %vm1013, %v1488, 0
      %1498 = vmatprep.subr.bf16.mxu0 %v1496
      %1499 = vmatpush1.bf16.msra.mxu0 %v1493
      %1500 = vmatprep.subr.bf16.mxu0 0
      %1501 = vmatpush1.bf16.msra.mxu0 0
      %1502 = vmatprep.subr.bf16.mxu0 0
      %1503 = vmatpush1.bf16.msra.mxu0 0
      %1504 = vmatprep.subr.bf16.mxu0 0
      %1505 = vmatpush1.bf16.msra.mxu0 0
      %1506 = vmatprep.subr.bf16.mxu0 0
      %1507 = vmatpush1.bf16.msra.mxu0 0
      %1508 = vmatprep.subr.bf16.mxu0 0
      %1509 = vmatpush1.bf16.msra.mxu0 0
      %1510 = vmatprep.subr.bf16.mxu0 0
      %1511 = vmatpush1.bf16.msra.mxu0 0
      %1512 = vmatprep.subr.bf16.mxu0 0
      %1513 = vmatpush1.bf16.msra.mxu0 0
      %1514 = vmatprep.subr.bf16.mxu0 0
      %1515 = vmatpush1.bf16.msra.mxu0 0
      %1516 = vmatprep.subr.bf16.mxu0 0
      %1517 = vmatpush1.bf16.msra.mxu0 0
      %1518 = vmatprep.subr.bf16.mxu0 0
      %1519 = vmatpush1.bf16.msra.mxu0 0
      %1520 = vmatprep.subr.bf16.mxu0 0
      %1521 = vmatpush1.bf16.msra.mxu0 0
      %1522 = vmatprep.subr.bf16.mxu0 0
      %1523 = vmatpush1.bf16.msra.mxu0 0
      %1524 = vmatprep.subr.bf16.mxu0 0
      %1525 = vmatpush1.bf16.msra.mxu0 0
      %1526 = vmatprep.subr.bf16.mxu0 0
      %1527 = vmatpush1.bf16.msra.mxu0 0
      %1528 = vmatprep.subr.bf16.mxu0 0
      %1529 = vmatpush1.bf16.msra.mxu0 0
      %1530 = vmatprep.mubr.bf16.mxu0 0
      %1531 = vmatmul.mubr.bf16.gmra.mrb[0].mxu0 %v1490
      %v1532 = vpop.f32.mrb[0].mxu0
      %v1533 = vadd.f32 0.0, %v1532
      %v1534 = vpop.f32.mrb[0].mxu0
      %v1535 = vadd.f32 0.0, %v1534
      %v1536 = vpop.f32.mrb[0].mxu0
      %v1537 = vpop.f32.mrb[0].mxu0
      %1538 = vdwg.mxu0
      %v1539 = vadd.f32 %v1473, %v1533
      %v1540 = vadd.f32 %v1475, %v1535
      %v1541 = vsel %vm954, %v1539, 0.0
      %v1542 = vsel %vm955, %v1540, 0.0
      %v1543 = vadd.f32 %v1357, %v1541
      %v1544 = vadd.f32 %v1358, %v1542
      %v1545 = vld [vmem:[%s4] sm:$0xff]
      %1547 = vset.pattern.permute.xlu0 0
      %1548 = vperm.xlu0 %1547, %v1545
      %v1549 = vpop.permute.xlu0 %1548
      %v1551 = vadd.f32 %v1543, %v1549
      %v1552 = vadd.f32 %v1544, %v1549
      %v1553 = vmax.f32 %v1551, 0.0
      %v1554 = vmax.f32 %v1552, 0.0
      %1555 = vst [vmem:[%s224] sm:$0xff] %v1553
      %1556 = vst [vmem:[%s224 + $0x8] sm:$0xff] %v1554
      %p1557 = scmp.lt.s32.totalorder %s16, 1
      %s1558 = scalar_select %p1557, %s16, 1
      %s1559 = smul.addr %s1558, 2
      %s1560 = smul.addr %s1559, 8
      %s1561 = scalar_lea.vmem %s5, %s1560
      // Predicated region
      $region41: #{double_conv_fused.1} parent=39 // pred_check
        %p1562 = pneg %p144
      $region42: #{double_conv_fused.1} parent=39 // pred_check_branch
        %1564 = sbr.rel (%p1562) target = $region44
      $region43: #{double_conv_fused.1} parent=39 // pred_region
        _
      $region44: #{double_conv_fused.1} parent=39 // pred_fallthru
        _
    $region40: #{double_conv_fused.1} parent=5 // pred_fallthru
      _
    %p1565 = scmp.le.s32.totalorder 2, %s11
    // Predicated region
    $region45: #{double_conv_fused.1} parent=5 // pred_check
      %p1566 = pneg %p1565
    $region46: #{double_conv_fused.1} parent=5 // pred_check_branch
      %1568 = sbr.rel (%p1566) target = $region48
    $region47: #{double_conv_fused.1} parent=5 // pred_region
      %s1569 = ssub.s32 %s11, 2
      // Predicated region
      $region49: #{double_conv_fused.1} parent=47 // pred_check
        %p1570 = pneg %p150
      $region50: #{double_conv_fused.1} parent=47 // pred_check_branch
        %1572 = sbr.rel (%p1570) target = $region52
      $region51: #{double_conv_fused.1} parent=47 // pred_region
        %p1573 = scmp.lt.s32.totalorder %s17, 1
        %s1574 = scalar_select %p1573, %s17, 1
        %s1575 = smul.addr %s1574, 2
        %s1576 = smul.addr %s1575, 8
        %s1577 = scalar_lea.vmem %s5, %s1576
      $region52: #{double_conv_fused.1} parent=47 // pred_fallthru
        _
    $region48: #{double_conv_fused.1} parent=5 // pred_fallthru
      _
  $region6: #{double_conv_fused.1} parent=0 // loop_footer
    %s15 = sadd.s32 1, %s11
  $region7: #{double_conv_fused.1} parent=0 // loop_footer_branch
    %10 = sbr.rel target = $region3
  $region8: #{double_conv_fused.1} parent=0 // loop_exit
    _

</llo_original>
